<compile_context>
chip_gen: v5e
topology: v5e:2x2
jax: 0.10.0
libtpu: 0.0.40
codegen_flags: <defaults>
</compile_context>

<pallas_src>
import jax
import jax.numpy as jnp
from jax.experimental import pallas as pl
from jax.experimental.pallas import tpu as pltpu

# ---- model hyper-parameters (opt / img_shape from the reference module) -----
N_CLASSES = 10
IMG_SHAPE = (1, 16, 16)                                  # (C, H, W)
IMG_FLAT  = IMG_SHAPE[0] * IMG_SHAPE[1] * IMG_SHAPE[2]   # 256 (lane-aligned)
HIDDEN    = 512
D_IN      = N_CLASSES + IMG_FLAT                         # 266 (module's layer-1 K)
CLS_PAD   = 16                                           # one-hot width (sublane tile)
OUT_PAD   = 128                                          # lane-dense output width


def _round_up(x, m):
    return ((x + m - 1) // m) * m


# ----------------------------- Pallas kernel --------------------------------
def _mlp_kernel(x_ref, oh_ref, t1_ref, w1_ref, w2_ref, b2_ref,
                w3_ref, b3_ref, w4_ref, b4_ref, o_ref):
    leak = jnp.float32(0.2)

    def lrelu(v):                                  # f32 epilogue (v5e-safe)
        return jnp.where(v > 0, v, leak * v)

    # Layer 1: image part in bf16 on the MXU (f32 accumulate); label-embedding
    # part (incl. b1) comes from the per-class f32 table selected by an exact
    # one-hot matmul (tiny: K=16).
    x_bf16 = x_ref[...].astype(jnp.bfloat16)
    h = jnp.dot(x_bf16, w1_ref[...], preferred_element_type=jnp.float32)
    h += jnp.dot(oh_ref[...], t1_ref[...], preferred_element_type=jnp.float32)
    h = lrelu(h)

    # TODO(synk): nn.Dropout(0.4) is treated as identity (inference/eval mode).
    h = jnp.dot(h.astype(jnp.bfloat16), w2_ref[...],
                preferred_element_type=jnp.float32) + b2_ref[...]
    h = lrelu(h)

    h = jnp.dot(h.astype(jnp.bfloat16), w3_ref[...],
                preferred_element_type=jnp.float32) + b3_ref[...]
    h = lrelu(h)

    out = jnp.dot(h.astype(jnp.bfloat16), w4_ref[...],
                  preferred_element_type=jnp.float32) + b4_ref[...]
    o_ref[...] = out.astype(o_ref.dtype)           # bf16, lane-dense


# ------------------------------ param packing --------------------------------
def pack_params(params):
    """One-time repacking: bf16 weights + folded per-class layer-1 table."""
    # Per-class layer-1 contribution (embedding row through w1[:n_classes]),
    # with b1 folded in: exactly one table row is selected per example by the
    # one-hot matmul, so the fold is exact.
    t1 = jnp.dot(params["emb"].astype(jnp.bfloat16),
                 params["w1"][:N_CLASSES].astype(jnp.bfloat16),
                 preferred_element_type=jnp.float32) + params["b1"][None, :]
    t1 = jnp.zeros((CLS_PAD, HIDDEN), jnp.float32).at[:N_CLASSES].set(t1)

    w4 = jnp.zeros((HIDDEN, OUT_PAD), jnp.bfloat16)
    w4 = w4.at[:, :1].set(params["w4"].astype(jnp.bfloat16))
    b4 = jnp.zeros((1, OUT_PAD), jnp.float32)
    b4 = b4.at[:, :1].set(params["b4"].reshape(1, 1))

    return dict(
        t1=t1,                                               # (16, 512) f32
        w1=params["w1"][N_CLASSES:].astype(jnp.bfloat16),    # (256, 512) bf16
        w2=params["w2"].astype(jnp.bfloat16),
        b2=params["b2"].reshape(1, HIDDEN).astype(jnp.float32),
        w3=params["w3"].astype(jnp.bfloat16),
        b3=params["b3"].reshape(1, HIDDEN).astype(jnp.float32),
        w4=w4,
        b4=b4,
    )


# ------------------------------ forward wrapper -------------------------------
def discriminator_forward(img, labels, packed):
    """img: (B, C, H, W) float, labels: (B,) int32 -> validity (B, 1) float32."""
    B = img.shape[0]

    # --- batch tiling ---------------------------------------------------------
    TB_MAX = 512
    B16 = max(16, _round_up(B, 16))
    if B16 <= TB_MAX:
        TB, n_tiles = B16, 1                 # small/medium: one tile (DMA/latency bound)
    elif B16 <= 2 * TB_MAX:
        TB = _round_up((B16 + 1) // 2, 16)   # two balanced tiles -> both v7x TCs
        n_tiles = 2
    else:
        TB = TB_MAX                          # big tiles fill the 256-wide MXU
        n_tiles = pl.cdiv(B16, TB)
    B_pad = TB * n_tiles

    # `img.view(B, -1)` + `.float()`; reshape of contiguous NCHW is free.
    flat = img.reshape(B, IMG_FLAT).astype(jnp.float32)
    if B_pad != B:
        flat = jnp.zeros((B_pad, IMG_FLAT), jnp.float32).at[:B].set(flat)
        labels = jnp.zeros((B_pad,), labels.dtype).at[:B].set(labels)
    onehot = jax.nn.one_hot(labels, CLS_PAD, dtype=jnp.float32)    # (B_pad, 16)

    inputs = (flat, onehot, packed["t1"], packed["w1"], packed["w2"],
              packed["b2"], packed["w3"], packed["b3"], packed["w4"],
              packed["b4"])

    def tiled(width):                        # per-batch-tile blocks
        return pl.BlockSpec((TB, width), lambda i: (i, 0))

    def const_spec(arr):                     # VMEM-resident across batch tiles
        return pl.BlockSpec(arr.shape, lambda i: (0, 0))

    flops = 2 * B_pad * (IMG_FLAT * HIDDEN + CLS_PAD * HIDDEN
                         + 2 * HIDDEN * HIDDEN + HIDDEN * OUT_PAD)
    bytes_accessed = sum(int(a.size) * a.dtype.itemsize for a in inputs) \
                     + B_pad * OUT_PAD * 2

    out = pl.pallas_call(
        _mlp_kernel,
        out_shape=jax.ShapeDtypeStruct((B_pad, OUT_PAD), jnp.bfloat16),
        grid_spec=pl.GridSpec(
            grid=(n_tiles,),
            in_specs=[tiled(IMG_FLAT), tiled(CLS_PAD)]
                     + [const_spec(a) for a in inputs[2:]],
            out_specs=pl.BlockSpec((TB, OUT_PAD), lambda i: (i, 0)),
        ),
        compiler_params=pltpu.CompilerParams(
            dimension_semantics=("parallel",),
            vmem_limit_bytes=32 * 1024 * 1024),
        cost_estimate=pl.CostEstimate(
            flops=flops, transcendentals=0, bytes_accessed=bytes_accessed),
    )(*inputs)

    return out[:B, :1].astype(jnp.float32)                        # (B, 1)


# --------------------------- deterministic params ----------------------------
def init_params(key):
    ks = jax.random.split(key, 9)

    def linear(kw, kb, fan_in, fan_out):
        bound = 1.0 / jnp.sqrt(jnp.float32(fan_in))
        w = jax.random.uniform(kw, (fan_in, fan_out), jnp.float32, -bound, bound)
        b = jax.random.uniform(kb, (fan_out,), jnp.float32, -bound, bound)
        return w, b

    emb = jax.random.normal(ks[0], (N_CLASSES, N_CLASSES), jnp.float32)
    w1, b1 = linear(ks[1], ks[2], D_IN,   HIDDEN)
    w2, b2 = linear(ks[3], ks[4], HIDDEN, HIDDEN)
    w3, b3 = linear(ks[5], ks[6], HIDDEN, HIDDEN)
    w4, b4 = linear(ks[7], ks[8], HIDDEN, 1)
    return dict(emb=emb, w1=w1, b1=b1, w2=w2, b2=b2,
                w3=w3, b3=b3, w4=w4, b4=b4)


# ----------------------------- pure-JAX reference ----------------------------
def _reference(img, labels, p):
    """Module forward under the same precision contract (bf16 operands, f32 acc)."""
    B = img.shape[0]
    d_in = jnp.concatenate([p["emb"][labels],
                            img.reshape(B, -1).astype(jnp.float32)], axis=-1)
    lrelu = lambda v: jnp.where(v > 0, v, 0.2 * v)

    def dot(a, w):
        return jnp.dot(a.astype(jnp.bfloat16), w.astype(jnp.bfloat16),
                       preferred_element_type=jnp.float32)

    h = lrelu(dot(d_in, p["w1"]) + p["b1"])
    h = lrelu(dot(h,    p["w2"]) + p["b2"])
    h = lrelu(dot(h,    p["w3"]) + p["b3"])
    return dot(h, p["w4"]) + p["b4"]


if __name__ == "__main__":
    key = jax.random.PRNGKey(0)
    k_img, k_lab, k_par = jax.random.split(key, 3)

    B = 2
    img    = jax.random.normal(k_img, (B,) + IMG_SHAPE, jnp.float32)   # (2,1,16,16)
    labels = jax.random.randint(k_lab, (B,), 0, N_CLASSES, jnp.int32)  # (2,)
    params = init_params(k_par)
    packed = pack_params(params)

    # jit keeps the packed bf16 weights device-resident across repeated calls
    # (the small-batch path is weight-DMA / launch-latency bound).
    fwd = jax.jit(discriminator_forward)
    validity = jax.block_until_ready(fwd(img, labels, packed))

    ref = _reference(img, labels, params)
    assert validity.shape == (B, 1)
    assert jnp.allclose(validity, ref, atol=1e-2, rtol=1e-2), (
        f"max abs diff = {jnp.max(jnp.abs(validity - ref))}")

    print("KERNEL_OK")
</pallas_src>

<mosaic_0001>
module attributes {stable_mosaic.version = 11 : i64} {
  func.func @_mlp_kernel(%arg0: i32, %arg1: memref<16x256xf32, #tpu.memory_space<vmem>>, %arg2: memref<16x16xf32, #tpu.memory_space<vmem>>, %arg3: memref<16x512xf32, #tpu.memory_space<vmem>>, %arg4: memref<256x512xbf16, #tpu.memory_space<vmem>>, %arg5: memref<512x512xbf16, #tpu.memory_space<vmem>>, %arg6: memref<1x512xf32, #tpu.memory_space<vmem>>, %arg7: memref<512x512xbf16, #tpu.memory_space<vmem>>, %arg8: memref<1x512xf32, #tpu.memory_space<vmem>>, %arg9: memref<512x128xbf16, #tpu.memory_space<vmem>>, %arg10: memref<1x128xf32, #tpu.memory_space<vmem>>, %arg11: memref<16x128xbf16, #tpu.memory_space<vmem>>) attributes {dimension_semantics = [#tpu.dimension_semantics<parallel>], iteration_bounds = array<i64: 1>, scalar_prefetch = 0 : i64, scratch_operands = 0 : i64, tpu.core_type = #tpu.core_type<tc>, window_params = [{transform_indices = @transform_0, window_bounds = array<i64: 16, 256>}, {transform_indices = @transform_1, window_bounds = array<i64: 16, 16>}, {pipeline_mode = #tpu.pipeline_mode<synchronous>, transform_indices = @transform_2, window_bounds = array<i64: 16, 512>}, {pipeline_mode = #tpu.pipeline_mode<synchronous>, transform_indices = @transform_3, window_bounds = array<i64: 256, 512>}, {pipeline_mode = #tpu.pipeline_mode<synchronous>, transform_indices = @transform_4, window_bounds = array<i64: 512, 512>}, {pipeline_mode = #tpu.pipeline_mode<synchronous>, transform_indices = @transform_5, window_bounds = array<i64: 1, 512>}, {pipeline_mode = #tpu.pipeline_mode<synchronous>, transform_indices = @transform_6, window_bounds = array<i64: 512, 512>}, {pipeline_mode = #tpu.pipeline_mode<synchronous>, transform_indices = @transform_7, window_bounds = array<i64: 1, 512>}, {pipeline_mode = #tpu.pipeline_mode<synchronous>, transform_indices = @transform_8, window_bounds = array<i64: 512, 128>}, {pipeline_mode = #tpu.pipeline_mode<synchronous>, transform_indices = @transform_9, window_bounds = array<i64: 1, 128>}, {transform_indices = @transform_10, window_bounds = array<i64: 16, 128>}]} {
    %c0 = arith.constant 0 : index
    %c0_0 = arith.constant 0 : index
    %0 = vector.load %arg1[%c0, %c0_0] : memref<16x256xf32, #tpu.memory_space<vmem>>, vector<16x256xf32>
    %1 = arith.truncf %0 : vector<16x256xf32> to vector<16x256xbf16>
    %c0_1 = arith.constant 0 : index
    %c0_2 = arith.constant 0 : index
    %2 = vector.load %arg4[%c0_1, %c0_2] : memref<256x512xbf16, #tpu.memory_space<vmem>>, vector<256x512xbf16>
    %cst = arith.constant dense<0.000000e+00> : vector<16x512xf32>
    %3 = tpu.matmul %1, %2, %cst {dimension_numbers = #tpu.dot_dimension_numbers<[1], [0], [0], [1], [0, 0, 1, 1], [], []>} : vector<16x256xbf16>, vector<256x512xbf16>, vector<16x512xf32> -> vector<16x512xf32>
    %c0_3 = arith.constant 0 : index
    %c0_4 = arith.constant 0 : index
    %4 = vector.load %arg2[%c0_3, %c0_4] : memref<16x16xf32, #tpu.memory_space<vmem>>, vector<16x16xf32>
    %c0_5 = arith.constant 0 : index
    %c0_6 = arith.constant 0 : index
    %5 = vector.load %arg3[%c0_5, %c0_6] : memref<16x512xf32, #tpu.memory_space<vmem>>, vector<16x512xf32>
    %cst_7 = arith.constant dense<0.000000e+00> : vector<16x512xf32>
    %6 = tpu.matmul %4, %5, %cst_7 {dimension_numbers = #tpu.dot_dimension_numbers<[1], [0], [0], [1], [0, 0, 1, 1], [], []>} : vector<16x16xf32>, vector<16x512xf32>, vector<16x512xf32> -> vector<16x512xf32>
    %7 = arith.addf %3, %6 : vector<16x512xf32>
    %cst_8 = arith.constant 0.000000e+00 : f32
    %8 = vector.broadcast %cst_8 : f32 to vector<16x512xf32>
    %9 = arith.cmpf ogt, %7, %8 : vector<16x512xf32>
    %cst_9 = arith.constant 2.000000e-01 : f32
    %10 = vector.broadcast %cst_9 : f32 to vector<16x512xf32>
    %11 = arith.mulf %10, %7 : vector<16x512xf32>
    %12 = arith.select %9, %7, %11 : vector<16x512xi1>, vector<16x512xf32>
    %13 = arith.truncf %12 : vector<16x512xf32> to vector<16x512xbf16>
    %c0_10 = arith.constant 0 : index
    %c0_11 = arith.constant 0 : index
    %14 = vector.load %arg5[%c0_10, %c0_11] : memref<512x512xbf16, #tpu.memory_space<vmem>>, vector<512x512xbf16>
    %cst_12 = arith.constant dense<0.000000e+00> : vector<16x512xf32>
    %15 = tpu.matmul %13, %14, %cst_12 {dimension_numbers = #tpu.dot_dimension_numbers<[1], [0], [0], [1], [0, 0, 1, 1], [], []>} : vector<16x512xbf16>, vector<512x512xbf16>, vector<16x512xf32> -> vector<16x512xf32>
    %c0_13 = arith.constant 0 : index
    %c0_14 = arith.constant 0 : index
    %16 = vector.load %arg6[%c0_13, %c0_14] : memref<1x512xf32, #tpu.memory_space<vmem>>, vector<1x512xf32>
    %17 = vector.broadcast %16 : vector<1x512xf32> to vector<16x512xf32>
    %18 = arith.addf %15, %17 : vector<16x512xf32>
    %cst_15 = arith.constant 0.000000e+00 : f32
    %19 = vector.broadcast %cst_15 : f32 to vector<16x512xf32>
    %20 = arith.cmpf ogt, %18, %19 : vector<16x512xf32>
    %cst_16 = arith.constant 2.000000e-01 : f32
    %21 = vector.broadcast %cst_16 : f32 to vector<16x512xf32>
    %22 = arith.mulf %21, %18 : vector<16x512xf32>
    %23 = arith.select %20, %18, %22 : vector<16x512xi1>, vector<16x512xf32>
    %24 = arith.truncf %23 : vector<16x512xf32> to vector<16x512xbf16>
    %c0_17 = arith.constant 0 : index
    %c0_18 = arith.constant 0 : index
    %25 = vector.load %arg7[%c0_17, %c0_18] : memref<512x512xbf16, #tpu.memory_space<vmem>>, vector<512x512xbf16>
    %cst_19 = arith.constant dense<0.000000e+00> : vector<16x512xf32>
    %26 = tpu.matmul %24, %25, %cst_19 {dimension_numbers = #tpu.dot_dimension_numbers<[1], [0], [0], [1], [0, 0, 1, 1], [], []>} : vector<16x512xbf16>, vector<512x512xbf16>, vector<16x512xf32> -> vector<16x512xf32>
    %c0_20 = arith.constant 0 : index
    %c0_21 = arith.constant 0 : index
    %27 = vector.load %arg8[%c0_20, %c0_21] : memref<1x512xf32, #tpu.memory_space<vmem>>, vector<1x512xf32>
    %28 = vector.broadcast %27 : vector<1x512xf32> to vector<16x512xf32>
    %29 = arith.addf %26, %28 : vector<16x512xf32>
    %cst_22 = arith.constant 0.000000e+00 : f32
    %30 = vector.broadcast %cst_22 : f32 to vector<16x512xf32>
    %31 = arith.cmpf ogt, %29, %30 : vector<16x512xf32>
    %cst_23 = arith.constant 2.000000e-01 : f32
    %32 = vector.broadcast %cst_23 : f32 to vector<16x512xf32>
    %33 = arith.mulf %32, %29 : vector<16x512xf32>
    %34 = arith.select %31, %29, %33 : vector<16x512xi1>, vector<16x512xf32>
    %35 = arith.truncf %34 : vector<16x512xf32> to vector<16x512xbf16>
    %c0_24 = arith.constant 0 : index
    %c0_25 = arith.constant 0 : index
    %36 = vector.load %arg9[%c0_24, %c0_25] : memref<512x128xbf16, #tpu.memory_space<vmem>>, vector<512x128xbf16>
    %cst_26 = arith.constant dense<0.000000e+00> : vector<16x128xf32>
    %37 = tpu.matmul %35, %36, %cst_26 {dimension_numbers = #tpu.dot_dimension_numbers<[1], [0], [0], [1], [0, 0, 1, 1], [], []>} : vector<16x512xbf16>, vector<512x128xbf16>, vector<16x128xf32> -> vector<16x128xf32>
    %c0_27 = arith.constant 0 : index
    %c0_28 = arith.constant 0 : index
    %38 = vector.load %arg10[%c0_27, %c0_28] : memref<1x128xf32, #tpu.memory_space<vmem>>, vector<1x128xf32>
    %39 = vector.broadcast %38 : vector<1x128xf32> to vector<16x128xf32>
    %40 = arith.addf %37, %39 : vector<16x128xf32>
    %41 = arith.truncf %40 : vector<16x128xf32> to vector<16x128xbf16>
    %c0_29 = arith.constant 0 : index
    %c0_30 = arith.constant 0 : index
    %42 = vector.load %arg11[%c0_29, %c0_30] : memref<16x128xbf16, #tpu.memory_space<vmem>>, vector<16x128xbf16>
    tpu.vector_store %arg11[%c0_29, %c0_30], %41 {strides = array<i32>} : memref<16x128xbf16, #tpu.memory_space<vmem>>, vector<16x128xbf16>,
    return
  }
  func.func @transform_0(%arg0: i32) -> (i32, i32) {
    %c0_i32 = arith.constant 0 : i32
    %c0_i32_0 = arith.constant 0 : i32
    return %arg0, %c0_i32 : i32, i32
  }
  func.func @transform_1(%arg0: i32) -> (i32, i32) {
    %c0_i32 = arith.constant 0 : i32
    %c0_i32_0 = arith.constant 0 : i32
    return %arg0, %c0_i32 : i32, i32
  }
  func.func @transform_2(%arg0: i32) -> (i32, i32) {
    %c0_i32 = arith.constant 0 : i32
    %c0_i32_0 = arith.constant 0 : i32
    %c0_i32_1 = arith.constant 0 : i32
    return %c0_i32, %c0_i32_0 : i32, i32
  }
  func.func @transform_3(%arg0: i32) -> (i32, i32) {
    %c0_i32 = arith.constant 0 : i32
    %c0_i32_0 = arith.constant 0 : i32
    %c0_i32_1 = arith.constant 0 : i32
    return %c0_i32, %c0_i32_0 : i32, i32
  }
  func.func @transform_4(%arg0: i32) -> (i32, i32) {
    %c0_i32 = arith.constant 0 : i32
    %c0_i32_0 = arith.constant 0 : i32
    %c0_i32_1 = arith.constant 0 : i32
    return %c0_i32, %c0_i32_0 : i32, i32
  }
  func.func @transform_5(%arg0: i32) -> (i32, i32) {
    %c0_i32 = arith.constant 0 : i32
    %c0_i32_0 = arith.constant 0 : i32
    %c0_i32_1 = arith.constant 0 : i32
    return %c0_i32, %c0_i32_0 : i32, i32
  }
  func.func @transform_6(%arg0: i32) -> (i32, i32) {
    %c0_i32 = arith.constant 0 : i32
    %c0_i32_0 = arith.constant 0 : i32
    %c0_i32_1 = arith.constant 0 : i32
    return %c0_i32, %c0_i32_0 : i32, i32
  }
  func.func @transform_7(%arg0: i32) -> (i32, i32) {
    %c0_i32 = arith.constant 0 : i32
    %c0_i32_0 = arith.constant 0 : i32
    %c0_i32_1 = arith.constant 0 : i32
    return %c0_i32, %c0_i32_0 : i32, i32
  }
  func.func @transform_8(%arg0: i32) -> (i32, i32) {
    %c0_i32 = arith.constant 0 : i32
    %c0_i32_0 = arith.constant 0 : i32
    %c0_i32_1 = arith.constant 0 : i32
    return %c0_i32, %c0_i32_0 : i32, i32
  }
  func.func @transform_9(%arg0: i32) -> (i32, i32) {
    %c0_i32 = arith.constant 0 : i32
    %c0_i32_0 = arith.constant 0 : i32
    %c0_i32_1 = arith.constant 0 : i32
    return %c0_i32, %c0_i32_0 : i32, i32
  }
  func.func @transform_10(%arg0: i32) -> (i32, i32) {
    %c0_i32 = arith.constant 0 : i32
    %c0_i32_0 = arith.constant 0 : i32
    return %arg0, %c0_i32 : i32, i32
  }
}

</mosaic_0001>

<llo_original>
// kernel: discriminator_forward.1
$region0: #{discriminator_forward.1}
  #allocation0 [shape = 'u32[]', space=smem, size = 0x4, offset = 0x4, fixed_abs, tag = 'smem constant byte address 0x4 - core index']
  #allocation1 [shape = 'u32[72,128]{1,0:T(1,128)}', space=vmem, size = 0x9000, scoped, tag = 'internal scratch']
  %s0 = inlined_call_operand.vmem [shape: f32[16,256], index: 0, kind: input, shape index: {}]
  %s1 = inlined_call_operand.vmem [shape: f32[16,16], index: 1, kind: input, shape index: {}]
  %s2 = inlined_call_operand.vmem [shape: f32[16,512], index: 2, kind: input, shape index: {}]
  %s3 = inlined_call_operand.hbm [shape: bf16[256,512], index: 3, kind: input, shape index: {}]
  %s4 = inlined_call_operand.hbm [shape: bf16[512,512], index: 4, kind: input, shape index: {}]
  %s5 = inlined_call_operand.vmem [shape: f32[1,512], index: 5, kind: input, shape index: {}]
  %s6 = inlined_call_operand.hbm [shape: bf16[512,512], index: 6, kind: input, shape index: {}]
  %s7 = inlined_call_operand.vmem [shape: f32[1,512], index: 7, kind: input, shape index: {}]
  %s8 = inlined_call_operand.hbm [shape: bf16[512,128], index: 8, kind: input, shape index: {}]
  %s9 = inlined_call_operand.vmem [shape: f32[1,128], index: 9, kind: input, shape index: {}]
  %s10 = inlined_call_operand.vmem [shape: bf16[16,128], index: 10, kind: output, shape index: {}]
  %s11 = sld [smem:[#allocation0]]
  $region66: #{discriminator_forward.1} parent=0
    _
  %s13 = ssub.s32 1, %s11
  %s14 = scalar_select 0, %s13, %s11
  $region1: #{discriminator_forward.1} parent=0
    #allocation2 [shape = 'u8[262144]{0}', space=vmem, size = 0x40000, scoped, tag = 'input window, operand 3, single buffered']
    #allocation3 [shape = 's32[1]{0}', space=sflag, size = 0x4, scoped, tag = 'scoped memory for discriminator_forward.1']
    #allocation4 [shape = 'u8[524288]{0}', space=vmem, size = 0x80000, scoped, tag = 'input window, operand 4, single buffered']
    #allocation5 [shape = 's32[1]{0}', space=sflag, size = 0x4, scoped, tag = 'scoped memory for discriminator_forward.1']
    #allocation6 [shape = 'u8[524288]{0}', space=vmem, size = 0x80000, scoped, tag = 'input window, operand 6, single buffered']
    #allocation7 [shape = 'u8[131072]{0}', space=vmem, size = 0x20000, scoped, tag = 'input window, operand 8, single buffered']
    #allocation8 [shape = 's32[1]{0}', space=sflag, size = 0x4, scoped, tag = 'scoped memory for discriminator_forward.1']
    %15 = vsyncpa [#allocation3], 0
    %16 = vsyncpa [#allocation5], 0
    %17 = vsyncpa [#allocation8], 0
    // Predicated region
    $region2: #{discriminator_forward.1} parent=1 // pred_check
      _
    $region3: #{discriminator_forward.1} parent=1 // pred_check_branch
      %19 = sbr.rel (0) target = $region5
    $region4: #{discriminator_forward.1} parent=1 // pred_region
      _
    $region5: #{discriminator_forward.1} parent=1 // pred_fallthru
      _
    // Predicated region
    $region6: #{discriminator_forward.1} parent=1 // pred_check
      _
    $region7: #{discriminator_forward.1} parent=1 // pred_check_branch
      %21 = sbr.rel (0) target = $region9
    $region8: #{discriminator_forward.1} parent=1 // pred_region
      _
    $region9: #{discriminator_forward.1} parent=1 // pred_fallthru
      _
    // Predicated region
    $region10: #{discriminator_forward.1} parent=1 // pred_check
      _
    $region11: #{discriminator_forward.1} parent=1 // pred_check_branch
      %23 = sbr.rel (0) target = $region13
    $region12: #{discriminator_forward.1} parent=1 // pred_region
      _
    $region13: #{discriminator_forward.1} parent=1 // pred_fallthru
      _
    // Predicated region
    $region14: #{discriminator_forward.1} parent=1 // pred_check
      _
    $region15: #{discriminator_forward.1} parent=1 // pred_check_branch
      %25 = sbr.rel (0) target = $region17
    $region16: #{discriminator_forward.1} parent=1 // pred_region
      %27 = vsyncadd [#allocation3], 0
      %s28 = sshll.u32 %s3, 4
      %s29 = int_to_ptr.hbm [resolvable:$true] %s28
      %s30 = sshll.u32 [#allocation2], 4
      %s31 = int_to_ptr.vmem [resolvable:$true] %s30
      %36 = dma.hbm_to_vmem [thread:$0]  %s29, 8192, %s31, [#allocation3], 256, 256, 16
    $region17: #{discriminator_forward.1} parent=1 // pred_fallthru
      _
    // Predicated region
    $region18: #{discriminator_forward.1} parent=1 // pred_check
      _
    $region19: #{discriminator_forward.1} parent=1 // pred_check_branch
      %38 = sbr.rel (0) target = $region21
    $region20: #{discriminator_forward.1} parent=1 // pred_region
      %40 = vsyncadd [#allocation5], 0
      %s41 = sshll.u32 %s4, 4
      %s42 = int_to_ptr.hbm [resolvable:$true] %s41
      %s43 = sshll.u32 [#allocation4], 4
      %s44 = int_to_ptr.vmem [resolvable:$true] %s43
      %49 = dma.hbm_to_vmem [thread:$0]  %s42, 16384, %s44, [#allocation5], 256, 256, 16
    $region21: #{discriminator_forward.1} parent=1 // pred_fallthru
      _
    // Predicated region
    $region22: #{discriminator_forward.1} parent=1 // pred_check
      _
    $region23: #{discriminator_forward.1} parent=1 // pred_check_branch
      %51 = sbr.rel (0) target = $region25
    $region24: #{discriminator_forward.1} parent=1 // pred_region
      _
    $region25: #{discriminator_forward.1} parent=1 // pred_fallthru
      _
    // Predicated region
    $region26: #{discriminator_forward.1} parent=1 // pred_check
      _
    $region27: #{discriminator_forward.1} parent=1 // pred_check_branch
      %53 = sbr.rel (0) target = $region29
    $region28: #{discriminator_forward.1} parent=1 // pred_region
      %55 = vsyncadd [#allocation5], 0
      %s56 = sshll.u32 %s6, 4
      %s57 = int_to_ptr.hbm [resolvable:$true] %s56
      %s58 = sshll.u32 [#allocation6], 4
      %s59 = int_to_ptr.vmem [resolvable:$true] %s58
      %64 = dma.hbm_to_vmem [thread:$0]  %s57, 16384, %s59, [#allocation5], 256, 256, 16
    $region29: #{discriminator_forward.1} parent=1 // pred_fallthru
      _
    // Predicated region
    $region30: #{discriminator_forward.1} parent=1 // pred_check
      _
    $region31: #{discriminator_forward.1} parent=1 // pred_check_branch
      %66 = sbr.rel (0) target = $region33
    $region32: #{discriminator_forward.1} parent=1 // pred_region
      _
    $region33: #{discriminator_forward.1} parent=1 // pred_fallthru
      _
    // Predicated region
    $region34: #{discriminator_forward.1} parent=1 // pred_check
      _
    $region35: #{discriminator_forward.1} parent=1 // pred_check_branch
      %68 = sbr.rel (0) target = $region37
    $region36: #{discriminator_forward.1} parent=1 // pred_region
      %70 = vsyncadd [#allocation8], 0
      %s71 = sshll.u32 %s8, 4
      %s72 = int_to_ptr.hbm [resolvable:$true] %s71
      %s73 = sshll.u32 [#allocation7], 4
      %s74 = int_to_ptr.vmem [resolvable:$true] %s73
      %79 = dma.hbm_to_vmem [thread:$0]  %s72, 4096, %s74, [#allocation8], 64, 64, 4
    $region37: #{discriminator_forward.1} parent=1 // pred_fallthru
      _
    // Predicated region
    $region38: #{discriminator_forward.1} parent=1 // pred_check
      _
    $region39: #{discriminator_forward.1} parent=1 // pred_check_branch
      %81 = sbr.rel (0) target = $region41
    $region40: #{discriminator_forward.1} parent=1 // pred_region
      _
    $region41: #{discriminator_forward.1} parent=1 // pred_fallthru
      _
    // Predicated region
    $region42: #{discriminator_forward.1} parent=1 // pred_check
      _
    $region43: #{discriminator_forward.1} parent=1 // pred_check_branch
      %83 = sbr.rel (0) target = $region45
    $region44: #{discriminator_forward.1} parent=1 // pred_region
      %85 = dma.done [#allocation3], 8192
    $region45: #{discriminator_forward.1} parent=1 // pred_fallthru
      _
    // Predicated region
    $region46: #{discriminator_forward.1} parent=1 // pred_check
      _
    $region47: #{discriminator_forward.1} parent=1 // pred_check_branch
      %87 = sbr.rel (0) target = $region49
    $region48: #{discriminator_forward.1} parent=1 // pred_region
      %89 = dma.done [#allocation5], 16384
    $region49: #{discriminator_forward.1} parent=1 // pred_fallthru
      _
    // Predicated region
    $region50: #{discriminator_forward.1} parent=1 // pred_check
      _
    $region51: #{discriminator_forward.1} parent=1 // pred_check_branch
      %91 = sbr.rel (0) target = $region53
    $region52: #{discriminator_forward.1} parent=1 // pred_region
      %93 = dma.done [#allocation5], 16384
    $region53: #{discriminator_forward.1} parent=1 // pred_fallthru
      _
    // Predicated region
    $region54: #{discriminator_forward.1} parent=1 // pred_check
      _
    $region55: #{discriminator_forward.1} parent=1 // pred_check_branch
      %95 = sbr.rel (0) target = $region57
    $region56: #{discriminator_forward.1} parent=1 // pred_region
      %97 = dma.done [#allocation8], 4096
    $region57: #{discriminator_forward.1} parent=1 // pred_fallthru
      _
    %v98 = vld [vmem:[%s0] sm:$0xff]
    %v99 = vld [vmem:[%s0 + $0x8] sm:$0xff]
    %v100 = vld [vmem:[%s0 + $0x10] sm:$0xff]
    %v101 = vld [vmem:[%s0 + $0x18] sm:$0xff]
    %v102 = vpack.c.bf16 %v100, %v98
    %v103 = vpack.c.bf16 %v101, %v99
    %v104 = vld [vmem:[#allocation2] sm:$0xff]
    %v105 = vld [vmem:[#allocation2 + $0x8] sm:$0xff]
    %v106 = vld [vmem:[#allocation2 + $0x10] sm:$0xff]
    %v107 = vld [vmem:[#allocation2 + $0x18] sm:$0xff]
    %v108 = vld [vmem:[#allocation2 + $0x20] sm:$0xff]
    %v109 = vld [vmem:[#allocation2 + $0x28] sm:$0xff]
    %v110 = vld [vmem:[#allocation2 + $0x30] sm:$0xff]
    %v111 = vld [vmem:[#allocation2 + $0x38] sm:$0xff]
    %v112 = vld [vmem:[#allocation2 + $0x40] sm:$0xff]
    %v113 = vld [vmem:[#allocation2 + $0x48] sm:$0xff]
    %v114 = vld [vmem:[#allocation2 + $0x50] sm:$0xff]
    %v115 = vld [vmem:[#allocation2 + $0x58] sm:$0xff]
    %v116 = vld [vmem:[#allocation2 + $0x60] sm:$0xff]
    %v117 = vld [vmem:[#allocation2 + $0x68] sm:$0xff]
    %v118 = vld [vmem:[#allocation2 + $0x70] sm:$0xff]
    %v119 = vld [vmem:[#allocation2 + $0x78] sm:$0xff]
    %v120 = vld [vmem:[#allocation2 + $0x80] sm:$0xff]
    %v121 = vld [vmem:[#allocation2 + $0x88] sm:$0xff]
    %v122 = vld [vmem:[#allocation2 + $0x90] sm:$0xff]
    %v123 = vld [vmem:[#allocation2 + $0x98] sm:$0xff]
    %v124 = vld [vmem:[#allocation2 + $0xa0] sm:$0xff]
    %v125 = vld [vmem:[#allocation2 + $0xa8] sm:$0xff]
    %v126 = vld [vmem:[#allocation2 + $0xb0] sm:$0xff]
    %v127 = vld [vmem:[#allocation2 + $0xb8] sm:$0xff]
    %v128 = vld [vmem:[#allocation2 + $0xc0] sm:$0xff]
    %v129 = vld [vmem:[#allocation2 + $0xc8] sm:$0xff]
    %v130 = vld [vmem:[#allocation2 + $0xd0] sm:$0xff]
    %v131 = vld [vmem:[#allocation2 + $0xd8] sm:$0xff]
    %v132 = vld [vmem:[#allocation2 + $0xe0] sm:$0xff]
    %v133 = vld [vmem:[#allocation2 + $0xe8] sm:$0xff]
    %v134 = vld [vmem:[#allocation2 + $0xf0] sm:$0xff]
    %v135 = vld [vmem:[#allocation2 + $0xf8] sm:$0xff]
    %v136 = vld [vmem:[#allocation2 + $0x100] sm:$0xff]
    %v137 = vld [vmem:[#allocation2 + $0x108] sm:$0xff]
    %v138 = vld [vmem:[#allocation2 + $0x110] sm:$0xff]
    %v139 = vld [vmem:[#allocation2 + $0x118] sm:$0xff]
    %v140 = vld [vmem:[#allocation2 + $0x120] sm:$0xff]
    %v141 = vld [vmem:[#allocation2 + $0x128] sm:$0xff]
    %v142 = vld [vmem:[#allocation2 + $0x130] sm:$0xff]
    %v143 = vld [vmem:[#allocation2 + $0x138] sm:$0xff]
    %v144 = vld [vmem:[#allocation2 + $0x140] sm:$0xff]
    %v145 = vld [vmem:[#allocation2 + $0x148] sm:$0xff]
    %v146 = vld [vmem:[#allocation2 + $0x150] sm:$0xff]
    %v147 = vld [vmem:[#allocation2 + $0x158] sm:$0xff]
    %v148 = vld [vmem:[#allocation2 + $0x160] sm:$0xff]
    %v149 = vld [vmem:[#allocation2 + $0x168] sm:$0xff]
    %v150 = vld [vmem:[#allocation2 + $0x170] sm:$0xff]
    %v151 = vld [vmem:[#allocation2 + $0x178] sm:$0xff]
    %v152 = vld [vmem:[#allocation2 + $0x180] sm:$0xff]
    %v153 = vld [vmem:[#allocation2 + $0x188] sm:$0xff]
    %v154 = vld [vmem:[#allocation2 + $0x190] sm:$0xff]
    %v155 = vld [vmem:[#allocation2 + $0x198] sm:$0xff]
    %v156 = vld [vmem:[#allocation2 + $0x1a0] sm:$0xff]
    %v157 = vld [vmem:[#allocation2 + $0x1a8] sm:$0xff]
    %v158 = vld [vmem:[#allocation2 + $0x1b0] sm:$0xff]
    %v159 = vld [vmem:[#allocation2 + $0x1b8] sm:$0xff]
    %v160 = vld [vmem:[#allocation2 + $0x1c0] sm:$0xff]
    %v161 = vld [vmem:[#allocation2 + $0x1c8] sm:$0xff]
    %v162 = vld [vmem:[#allocation2 + $0x1d0] sm:$0xff]
    %v163 = vld [vmem:[#allocation2 + $0x1d8] sm:$0xff]
    %v164 = vld [vmem:[#allocation2 + $0x1e0] sm:$0xff]
    %v165 = vld [vmem:[#allocation2 + $0x1e8] sm:$0xff]
    %v166 = vld [vmem:[#allocation2 + $0x1f0] sm:$0xff]
    %v167 = vld [vmem:[#allocation2 + $0x1f8] sm:$0xff]
    %v168 = vld [vmem:[%s1] sm:$0xff]
    %v169 = vld [vmem:[%s1 + $0x8] sm:$0xff]
    %v170 = vld [vmem:[%s2] sm:$0xff]
    %v171 = vld [vmem:[%s2 + $0x8] sm:$0xff]
    %v172 = vld [vmem:[%s2 + $0x10] sm:$0xff]
    %v173 = vld [vmem:[%s2 + $0x18] sm:$0xff]
    %v174 = vld [vmem:[%s2 + $0x20] sm:$0xff]
    %v175 = vld [vmem:[%s2 + $0x28] sm:$0xff]
    %v176 = vld [vmem:[%s2 + $0x30] sm:$0xff]
    %v177 = vld [vmem:[%s2 + $0x38] sm:$0xff]
    %vm178 = vcmask 130048
    %v180 = vsel %vm178, %v168, 0
    %v183 = vsel %vm178, %v169, 0
    %185 = vmatpush.msra.mxu0 0.0
    %186 = vmatpush.msra.mxu0 0.0
    %187 = vmatpush.msra.mxu0 0.0
    %188 = vmatpush.msra.mxu0 0.0
    %189 = vmatpush.msra.mxu0 0.0
    %190 = vmatpush.msra.mxu0 0.0
    %191 = vmatpush.msra.mxu0 0.0
    %192 = vmatpush.msra.mxu0 0.0
    %193 = vmatpush.msra.mxu0 0.0
    %194 = vmatpush.msra.mxu0 0.0
    %195 = vmatpush.msra.mxu0 0.0
    %196 = vmatpush.msra.mxu0 0.0
    %197 = vmatpush.msra.mxu0 0.0
    %198 = vmatpush.msra.mxu0 0.0
    %199 = vmatpush.msra.mxu0 %v174
    %200 = vmatpush.msra.mxu0 %v170
    %201 = vmatmul.f32.gmra.mxu0 %v180
    %v202 = vpop.f32.mrf.mxu0
    %v203 = vadd.f32 0.0, %v202
    %204 = vmatmul.f32.gmra.mxu0 %v183
    %v205 = vpop.f32.mrf.mxu0
    %v206 = vadd.f32 0.0, %v205
    %207 = vdwg.mxu0
    %208 = vmatpush.msra.mxu0 0.0
    %209 = vmatpush.msra.mxu0 0.0
    %210 = vmatpush.msra.mxu0 0.0
    %211 = vmatpush.msra.mxu0 0.0
    %212 = vmatpush.msra.mxu0 0.0
    %213 = vmatpush.msra.mxu0 0.0
    %214 = vmatpush.msra.mxu0 0.0
    %215 = vmatpush.msra.mxu0 0.0
    %216 = vmatpush.msra.mxu0 0.0
    %217 = vmatpush.msra.mxu0 0.0
    %218 = vmatpush.msra.mxu0 0.0
    %219 = vmatpush.msra.mxu0 0.0
    %220 = vmatpush.msra.mxu0 0.0
    %221 = vmatpush.msra.mxu0 0.0
    %222 = vmatpush.msra.mxu0 %v175
    %223 = vmatpush.msra.mxu0 %v171
    %224 = vmatmul.f32.gmra.mxu0 %v180
    %v225 = vpop.f32.mrf.mxu0
    %v226 = vadd.f32 0.0, %v225
    %227 = vmatmul.f32.gmra.mxu0 %v183
    %v228 = vpop.f32.mrf.mxu0
    %v229 = vadd.f32 0.0, %v228
    %230 = vdwg.mxu0
    %231 = vmatpush.msra.mxu0 0.0
    %232 = vmatpush.msra.mxu0 0.0
    %233 = vmatpush.msra.mxu0 0.0
    %234 = vmatpush.msra.mxu0 0.0
    %235 = vmatpush.msra.mxu0 0.0
    %236 = vmatpush.msra.mxu0 0.0
    %237 = vmatpush.msra.mxu0 0.0
    %238 = vmatpush.msra.mxu0 0.0
    %239 = vmatpush.msra.mxu0 0.0
    %240 = vmatpush.msra.mxu0 0.0
    %241 = vmatpush.msra.mxu0 0.0
    %242 = vmatpush.msra.mxu0 0.0
    %243 = vmatpush.msra.mxu0 0.0
    %244 = vmatpush.msra.mxu0 0.0
    %245 = vmatpush.msra.mxu0 %v176
    %246 = vmatpush.msra.mxu0 %v172
    %247 = vmatmul.f32.gmra.mxu0 %v180
    %v248 = vpop.f32.mrf.mxu0
    %v249 = vadd.f32 0.0, %v248
    %250 = vmatmul.f32.gmra.mxu0 %v183
    %v251 = vpop.f32.mrf.mxu0
    %v252 = vadd.f32 0.0, %v251
    %253 = vdwg.mxu0
    %254 = vmatpush.msra.mxu0 0.0
    %255 = vmatpush.msra.mxu0 0.0
    %256 = vmatpush.msra.mxu0 0.0
    %257 = vmatpush.msra.mxu0 0.0
    %258 = vmatpush.msra.mxu0 0.0
    %259 = vmatpush.msra.mxu0 0.0
    %260 = vmatpush.msra.mxu0 0.0
    %261 = vmatpush.msra.mxu0 0.0
    %262 = vmatpush.msra.mxu0 0.0
    %263 = vmatpush.msra.mxu0 0.0
    %264 = vmatpush.msra.mxu0 0.0
    %265 = vmatpush.msra.mxu0 0.0
    %266 = vmatpush.msra.mxu0 0.0
    %267 = vmatpush.msra.mxu0 0.0
    %268 = vmatpush.msra.mxu0 %v177
    %269 = vmatpush.msra.mxu0 %v173
    %270 = vmatmul.f32.gmra.mxu0 %v180
    %v271 = vpop.f32.mrf.mxu0
    %v272 = vadd.f32 0.0, %v271
    %273 = vmatmul.f32.gmra.mxu0 %v183
    %v274 = vpop.f32.mrf.mxu0
    %v275 = vadd.f32 0.0, %v274
    %276 = vdwg.mxu0
    %v341 = vunpack.c.l.b16 %v104
    %v342 = vunpack.c.h.b16 %v104
    %v343 = vunpack.c.l.b16 %v105
    %v344 = vunpack.c.h.b16 %v105
    %v345 = vunpack.c.l.b16 %v106
    %v346 = vunpack.c.h.b16 %v106
    %v347 = vunpack.c.l.b16 %v107
    %v348 = vunpack.c.h.b16 %v107
    %v349 = vunpack.c.l.b16 %v108
    %v350 = vunpack.c.h.b16 %v108
    %v351 = vunpack.c.l.b16 %v109
    %v352 = vunpack.c.h.b16 %v109
    %v353 = vunpack.c.l.b16 %v110
    %v354 = vunpack.c.h.b16 %v110
    %v355 = vunpack.c.l.b16 %v111
    %v356 = vunpack.c.h.b16 %v111
    %v357 = vunpack.c.l.b16 %v112
    %v358 = vunpack.c.h.b16 %v112
    %v359 = vunpack.c.l.b16 %v113
    %v360 = vunpack.c.h.b16 %v113
    %v361 = vunpack.c.l.b16 %v114
    %v362 = vunpack.c.h.b16 %v114
    %v363 = vunpack.c.l.b16 %v115
    %v364 = vunpack.c.h.b16 %v115
    %v365 = vunpack.c.l.b16 %v116
    %v366 = vunpack.c.h.b16 %v116
    %v367 = vunpack.c.l.b16 %v117
    %v368 = vunpack.c.h.b16 %v117
    %v369 = vunpack.c.l.b16 %v118
    %v370 = vunpack.c.h.b16 %v118
    %v371 = vunpack.c.l.b16 %v119
    %v372 = vunpack.c.h.b16 %v119
    %v373 = vunpack.c.l.b16 %v120
    %v374 = vunpack.c.h.b16 %v120
    %v375 = vunpack.c.l.b16 %v121
    %v376 = vunpack.c.h.b16 %v121
    %v377 = vunpack.c.l.b16 %v122
    %v378 = vunpack.c.h.b16 %v122
    %v379 = vunpack.c.l.b16 %v123
    %v380 = vunpack.c.h.b16 %v123
    %v381 = vunpack.c.l.b16 %v124
    %v382 = vunpack.c.h.b16 %v124
    %v383 = vunpack.c.l.b16 %v125
    %v384 = vunpack.c.h.b16 %v125
    %v385 = vunpack.c.l.b16 %v126
    %v386 = vunpack.c.h.b16 %v126
    %v387 = vunpack.c.l.b16 %v127
    %v388 = vunpack.c.h.b16 %v127
    %v389 = vunpack.c.l.b16 %v128
    %v390 = vunpack.c.h.b16 %v128
    %v391 = vunpack.c.l.b16 %v129
    %v392 = vunpack.c.h.b16 %v129
    %v393 = vunpack.c.l.b16 %v130
    %v394 = vunpack.c.h.b16 %v130
    %v395 = vunpack.c.l.b16 %v131
    %v396 = vunpack.c.h.b16 %v131
    %v397 = vunpack.c.l.b16 %v132
    %v398 = vunpack.c.h.b16 %v132
    %v399 = vunpack.c.l.b16 %v133
    %v400 = vunpack.c.h.b16 %v133
    %v401 = vunpack.c.l.b16 %v134
    %v402 = vunpack.c.h.b16 %v134
    %v403 = vunpack.c.l.b16 %v135
    %v404 = vunpack.c.h.b16 %v135
    %v405 = vunpack.c.l.b16 %v136
    %v406 = vunpack.c.h.b16 %v136
    %v407 = vunpack.c.l.b16 %v137
    %v408 = vunpack.c.h.b16 %v137
    %v409 = vunpack.c.l.b16 %v138
    %v410 = vunpack.c.h.b16 %v138
    %v411 = vunpack.c.l.b16 %v139
    %v412 = vunpack.c.h.b16 %v139
    %v413 = vunpack.c.l.b16 %v140
    %v414 = vunpack.c.h.b16 %v140
    %v415 = vunpack.c.l.b16 %v141
    %v416 = vunpack.c.h.b16 %v141
    %v417 = vunpack.c.l.b16 %v142
    %v418 = vunpack.c.h.b16 %v142
    %v419 = vunpack.c.l.b16 %v143
    %v420 = vunpack.c.h.b16 %v143
    %v421 = vunpack.c.l.b16 %v144
    %v422 = vunpack.c.h.b16 %v144
    %v423 = vunpack.c.l.b16 %v145
    %v424 = vunpack.c.h.b16 %v145
    %v425 = vunpack.c.l.b16 %v146
    %v426 = vunpack.c.h.b16 %v146
    %v427 = vunpack.c.l.b16 %v147
    %v428 = vunpack.c.h.b16 %v147
    %v429 = vunpack.c.l.b16 %v148
    %v430 = vunpack.c.h.b16 %v148
    %v431 = vunpack.c.l.b16 %v149
    %v432 = vunpack.c.h.b16 %v149
    %v433 = vunpack.c.l.b16 %v150
    %v434 = vunpack.c.h.b16 %v150
    %v435 = vunpack.c.l.b16 %v151
    %v436 = vunpack.c.h.b16 %v151
    %v437 = vunpack.c.l.b16 %v152
    %v438 = vunpack.c.h.b16 %v152
    %v439 = vunpack.c.l.b16 %v153
    %v440 = vunpack.c.h.b16 %v153
    %v441 = vunpack.c.l.b16 %v154
    %v442 = vunpack.c.h.b16 %v154
    %v443 = vunpack.c.l.b16 %v155
    %v444 = vunpack.c.h.b16 %v155
    %v445 = vunpack.c.l.b16 %v156
    %v446 = vunpack.c.h.b16 %v156
    %v447 = vunpack.c.l.b16 %v157
    %v448 = vunpack.c.h.b16 %v157
    %v449 = vunpack.c.l.b16 %v158
    %v450 = vunpack.c.h.b16 %v158
    %v451 = vunpack.c.l.b16 %v159
    %v452 = vunpack.c.h.b16 %v159
    %v453 = vunpack.c.l.b16 %v160
    %v454 = vunpack.c.h.b16 %v160
    %v455 = vunpack.c.l.b16 %v161
    %v456 = vunpack.c.h.b16 %v161
    %v457 = vunpack.c.l.b16 %v162
    %v458 = vunpack.c.h.b16 %v162
    %v459 = vunpack.c.l.b16 %v163
    %v460 = vunpack.c.h.b16 %v163
    %v461 = vunpack.c.l.b16 %v164
    %v462 = vunpack.c.h.b16 %v164
    %v463 = vunpack.c.l.b16 %v165
    %v464 = vunpack.c.h.b16 %v165
    %v465 = vunpack.c.l.b16 %v166
    %v466 = vunpack.c.h.b16 %v166
    %v467 = vunpack.c.l.b16 %v167
    %v468 = vunpack.c.h.b16 %v167
    %v469 = vpack.c.b16 %v345, %v341
    %v470 = vpack.c.b16 %v346, %v342
    %v471 = vpack.c.b16 %v347, %v343
    %v472 = vpack.c.b16 %v348, %v344
    %v473 = vpack.c.b16 %v353, %v349
    %v474 = vpack.c.b16 %v354, %v350
    %v475 = vpack.c.b16 %v355, %v351
    %v476 = vpack.c.b16 %v356, %v352
    %v477 = vpack.c.b16 %v361, %v357
    %v478 = vpack.c.b16 %v362, %v358
    %v479 = vpack.c.b16 %v363, %v359
    %v480 = vpack.c.b16 %v364, %v360
    %v481 = vpack.c.b16 %v369, %v365
    %v482 = vpack.c.b16 %v370, %v366
    %v483 = vpack.c.b16 %v371, %v367
    %v484 = vpack.c.b16 %v372, %v368
    %v485 = vpack.c.b16 %v377, %v373
    %v486 = vpack.c.b16 %v378, %v374
    %v487 = vpack.c.b16 %v379, %v375
    %v488 = vpack.c.b16 %v380, %v376
    %v489 = vpack.c.b16 %v385, %v381
    %v490 = vpack.c.b16 %v386, %v382
    %v491 = vpack.c.b16 %v387, %v383
    %v492 = vpack.c.b16 %v388, %v384
    %v493 = vpack.c.b16 %v393, %v389
    %v494 = vpack.c.b16 %v394, %v390
    %v495 = vpack.c.b16 %v395, %v391
    %v496 = vpack.c.b16 %v396, %v392
    %v497 = vpack.c.b16 %v401, %v397
    %v498 = vpack.c.b16 %v402, %v398
    %v499 = vpack.c.b16 %v403, %v399
    %v500 = vpack.c.b16 %v404, %v400
    %v501 = vpack.c.b16 %v409, %v405
    %v502 = vpack.c.b16 %v410, %v406
    %v503 = vpack.c.b16 %v411, %v407
    %v504 = vpack.c.b16 %v412, %v408
    %v505 = vpack.c.b16 %v417, %v413
    %v506 = vpack.c.b16 %v418, %v414
    %v507 = vpack.c.b16 %v419, %v415
    %v508 = vpack.c.b16 %v420, %v416
    %v509 = vpack.c.b16 %v425, %v421
    %v510 = vpack.c.b16 %v426, %v422
    %v511 = vpack.c.b16 %v427, %v423
    %v512 = vpack.c.b16 %v428, %v424
    %v513 = vpack.c.b16 %v433, %v429
    %v514 = vpack.c.b16 %v434, %v430
    %v515 = vpack.c.b16 %v435, %v431
    %v516 = vpack.c.b16 %v436, %v432
    %v517 = vpack.c.b16 %v441, %v437
    %v518 = vpack.c.b16 %v442, %v438
    %v519 = vpack.c.b16 %v443, %v439
    %v520 = vpack.c.b16 %v444, %v440
    %v521 = vpack.c.b16 %v449, %v445
    %v522 = vpack.c.b16 %v450, %v446
    %v523 = vpack.c.b16 %v451, %v447
    %v524 = vpack.c.b16 %v452, %v448
    %v525 = vpack.c.b16 %v457, %v453
    %v526 = vpack.c.b16 %v458, %v454
    %v527 = vpack.c.b16 %v459, %v455
    %v528 = vpack.c.b16 %v460, %v456
    %v529 = vpack.c.b16 %v465, %v461
    %v530 = vpack.c.b16 %v466, %v462
    %v531 = vpack.c.b16 %v467, %v463
    %v532 = vpack.c.b16 %v468, %v464
    %597 = vmatpush.bf16.msra.mxu0 %v497
    %598 = vmatpush.bf16.msra.mxu0 %v493
    %599 = vmatpush.bf16.msra.mxu0 %v489
    %600 = vmatpush.bf16.msra.mxu0 %v485
    %601 = vmatpush.bf16.msra.mxu0 %v481
    %602 = vmatpush.bf16.msra.mxu0 %v477
    %603 = vmatpush.bf16.msra.mxu0 %v473
    %604 = vmatpush.bf16.msra.mxu0 %v469
    %605 = vmatmul.bf16.gmra.mxu0 %v102
    %v606 = vpop.f32.mrf.mxu0
    %v607 = vadd.f32 %v203, %v606
    %v608 = vpop.f32.mrf.mxu0
    %v609 = vadd.f32 %v206, %v608
    %610 = vdwg.mxu0
    %611 = vmatpush.bf16.msra.mxu0 %v529
    %612 = vmatpush.bf16.msra.mxu0 %v525
    %613 = vmatpush.bf16.msra.mxu0 %v521
    %614 = vmatpush.bf16.msra.mxu0 %v517
    %615 = vmatpush.bf16.msra.mxu0 %v513
    %616 = vmatpush.bf16.msra.mxu0 %v509
    %617 = vmatpush.bf16.msra.mxu0 %v505
    %618 = vmatpush.bf16.msra.mxu0 %v501
    %619 = vmatmul.bf16.gmra.mxu0 %v103
    %v620 = vpop.f32.mrf.mxu0
    %v621 = vadd.f32 %v607, %v620
    %v622 = vpop.f32.mrf.mxu0
    %v623 = vadd.f32 %v609, %v622
    %624 = vdwg.mxu0
    %625 = vmatpush.bf16.msra.mxu0 %v498
    %626 = vmatpush.bf16.msra.mxu0 %v494
    %627 = vmatpush.bf16.msra.mxu0 %v490
    %628 = vmatpush.bf16.msra.mxu0 %v486
    %629 = vmatpush.bf16.msra.mxu0 %v482
    %630 = vmatpush.bf16.msra.mxu0 %v478
    %631 = vmatpush.bf16.msra.mxu0 %v474
    %632 = vmatpush.bf16.msra.mxu0 %v470
    %633 = vmatmul.bf16.gmra.mxu0 %v102
    %v634 = vpop.f32.mrf.mxu0
    %v635 = vadd.f32 %v226, %v634
    %v636 = vpop.f32.mrf.mxu0
    %v637 = vadd.f32 %v229, %v636
    %638 = vdwg.mxu0
    %639 = vmatpush.bf16.msra.mxu0 %v530
    %640 = vmatpush.bf16.msra.mxu0 %v526
    %641 = vmatpush.bf16.msra.mxu0 %v522
    %642 = vmatpush.bf16.msra.mxu0 %v518
    %643 = vmatpush.bf16.msra.mxu0 %v514
    %644 = vmatpush.bf16.msra.mxu0 %v510
    %645 = vmatpush.bf16.msra.mxu0 %v506
    %646 = vmatpush.bf16.msra.mxu0 %v502
    %647 = vmatmul.bf16.gmra.mxu0 %v103
    %v648 = vpop.f32.mrf.mxu0
    %v649 = vadd.f32 %v635, %v648
    %v650 = vpop.f32.mrf.mxu0
    %v651 = vadd.f32 %v637, %v650
    %652 = vdwg.mxu0
    %653 = vmatpush.bf16.msra.mxu0 %v499
    %654 = vmatpush.bf16.msra.mxu0 %v495
    %655 = vmatpush.bf16.msra.mxu0 %v491
    %656 = vmatpush.bf16.msra.mxu0 %v487
    %657 = vmatpush.bf16.msra.mxu0 %v483
    %658 = vmatpush.bf16.msra.mxu0 %v479
    %659 = vmatpush.bf16.msra.mxu0 %v475
    %660 = vmatpush.bf16.msra.mxu0 %v471
    %661 = vmatmul.bf16.gmra.mxu0 %v102
    %v662 = vpop.f32.mrf.mxu0
    %v663 = vadd.f32 %v249, %v662
    %v664 = vpop.f32.mrf.mxu0
    %v665 = vadd.f32 %v252, %v664
    %666 = vdwg.mxu0
    %667 = vmatpush.bf16.msra.mxu0 %v531
    %668 = vmatpush.bf16.msra.mxu0 %v527
    %669 = vmatpush.bf16.msra.mxu0 %v523
    %670 = vmatpush.bf16.msra.mxu0 %v519
    %671 = vmatpush.bf16.msra.mxu0 %v515
    %672 = vmatpush.bf16.msra.mxu0 %v511
    %673 = vmatpush.bf16.msra.mxu0 %v507
    %674 = vmatpush.bf16.msra.mxu0 %v503
    %675 = vmatmul.bf16.gmra.mxu0 %v103
    %v676 = vpop.f32.mrf.mxu0
    %v677 = vadd.f32 %v663, %v676
    %v678 = vpop.f32.mrf.mxu0
    %v679 = vadd.f32 %v665, %v678
    %680 = vdwg.mxu0
    %681 = vmatpush.bf16.msra.mxu0 %v500
    %682 = vmatpush.bf16.msra.mxu0 %v496
    %683 = vmatpush.bf16.msra.mxu0 %v492
    %684 = vmatpush.bf16.msra.mxu0 %v488
    %685 = vmatpush.bf16.msra.mxu0 %v484
    %686 = vmatpush.bf16.msra.mxu0 %v480
    %687 = vmatpush.bf16.msra.mxu0 %v476
    %688 = vmatpush.bf16.msra.mxu0 %v472
    %689 = vmatmul.bf16.gmra.mxu0 %v102
    %v690 = vpop.f32.mrf.mxu0
    %v691 = vadd.f32 %v272, %v690
    %v692 = vpop.f32.mrf.mxu0
    %v693 = vadd.f32 %v275, %v692
    %694 = vdwg.mxu0
    %695 = vmatpush.bf16.msra.mxu0 %v532
    %696 = vmatpush.bf16.msra.mxu0 %v528
    %697 = vmatpush.bf16.msra.mxu0 %v524
    %698 = vmatpush.bf16.msra.mxu0 %v520
    %699 = vmatpush.bf16.msra.mxu0 %v516
    %700 = vmatpush.bf16.msra.mxu0 %v512
    %701 = vmatpush.bf16.msra.mxu0 %v508
    %702 = vmatpush.bf16.msra.mxu0 %v504
    %703 = vmatmul.bf16.gmra.mxu0 %v103
    %v704 = vpop.f32.mrf.mxu0
    %v705 = vadd.f32 %v691, %v704
    %v706 = vpop.f32.mrf.mxu0
    %v707 = vadd.f32 %v693, %v706
    %708 = vdwg.mxu0
    %vm709 = vcmp.gt.f32.partialorder %v621, 0.0
    %vm710 = vcmp.gt.f32.partialorder %v649, 0.0
    %vm711 = vcmp.gt.f32.partialorder %v677, 0.0
    %vm712 = vcmp.gt.f32.partialorder %v705, 0.0
    %vm713 = vcmp.gt.f32.partialorder %v623, 0.0
    %vm714 = vcmp.gt.f32.partialorder %v651, 0.0
    %vm715 = vcmp.gt.f32.partialorder %v679, 0.0
    %vm716 = vcmp.gt.f32.partialorder %v707, 0.0
    %v717 = vmul.f32 %v621, 0.2
    %v718 = vmul.f32 %v649, 0.2
    %v719 = vmul.f32 %v677, 0.2
    %v720 = vmul.f32 %v705, 0.2
    %v721 = vmul.f32 %v623, 0.2
    %v722 = vmul.f32 %v651, 0.2
    %v723 = vmul.f32 %v679, 0.2
    %v724 = vmul.f32 %v707, 0.2
    %v725 = vsel %vm709, %v621, %v717
    %v726 = vsel %vm710, %v649, %v718
    %v727 = vsel %vm711, %v677, %v719
    %v728 = vsel %vm712, %v705, %v720
    %v729 = vsel %vm713, %v623, %v721
    %v730 = vsel %vm714, %v651, %v722
    %v731 = vsel %vm715, %v679, %v723
    %v732 = vsel %vm716, %v707, %v724
    %v733 = vpack.c.bf16 %v729, %v725
    %v734 = vpack.c.bf16 %v730, %v726
    %v735 = vpack.c.bf16 %v731, %v727
    %v736 = vpack.c.bf16 %v732, %v728
    %v737 = vld [vmem:[#allocation4] sm:$0xff]
    %v738 = vld [vmem:[#allocation4 + $0x8] sm:$0xff]
    %v739 = vld [vmem:[#allocation4 + $0x10] sm:$0xff]
    %v740 = vld [vmem:[#allocation4 + $0x18] sm:$0xff]
    %v741 = vld [vmem:[#allocation4 + $0x20] sm:$0xff]
    %v742 = vld [vmem:[#allocation4 + $0x28] sm:$0xff]
    %v743 = vld [vmem:[#allocation4 + $0x30] sm:$0xff]
    %v744 = vld [vmem:[#allocation4 + $0x38] sm:$0xff]
    %v745 = vld [vmem:[#allocation4 + $0x40] sm:$0xff]
    %v746 = vld [vmem:[#allocation4 + $0x48] sm:$0xff]
    %v747 = vld [vmem:[#allocation4 + $0x50] sm:$0xff]
    %v748 = vld [vmem:[#allocation4 + $0x58] sm:$0xff]
    %v749 = vld [vmem:[#allocation4 + $0x60] sm:$0xff]
    %v750 = vld [vmem:[#allocation4 + $0x68] sm:$0xff]
    %v751 = vld [vmem:[#allocation4 + $0x70] sm:$0xff]
    %v752 = vld [vmem:[#allocation4 + $0x78] sm:$0xff]
    %v753 = vld [vmem:[#allocation4 + $0x80] sm:$0xff]
    %v754 = vld [vmem:[#allocation4 + $0x88] sm:$0xff]
    %v755 = vld [vmem:[#allocation4 + $0x90] sm:$0xff]
    %v756 = vld [vmem:[#allocation4 + $0x98] sm:$0xff]
    %v757 = vld [vmem:[#allocation4 + $0xa0] sm:$0xff]
    %v758 = vld [vmem:[#allocation4 + $0xa8] sm:$0xff]
    %v759 = vld [vmem:[#allocation4 + $0xb0] sm:$0xff]
    %v760 = vld [vmem:[#allocation4 + $0xb8] sm:$0xff]
    %v761 = vld [vmem:[#allocation4 + $0xc0] sm:$0xff]
    %v762 = vld [vmem:[#allocation4 + $0xc8] sm:$0xff]
    %v763 = vld [vmem:[#allocation4 + $0xd0] sm:$0xff]
    %v764 = vld [vmem:[#allocation4 + $0xd8] sm:$0xff]
    %v765 = vld [vmem:[#allocation4 + $0xe0] sm:$0xff]
    %v766 = vld [vmem:[#allocation4 + $0xe8] sm:$0xff]
    %v767 = vld [vmem:[#allocation4 + $0xf0] sm:$0xff]
    %v768 = vld [vmem:[#allocation4 + $0xf8] sm:$0xff]
    %v769 = vld [vmem:[#allocation4 + $0x100] sm:$0xff]
    %v770 = vld [vmem:[#allocation4 + $0x108] sm:$0xff]
    %v771 = vld [vmem:[#allocation4 + $0x110] sm:$0xff]
    %v772 = vld [vmem:[#allocation4 + $0x118] sm:$0xff]
    %v773 = vld [vmem:[#allocation4 + $0x120] sm:$0xff]
    %v774 = vld [vmem:[#allocation4 + $0x128] sm:$0xff]
    %v775 = vld [vmem:[#allocation4 + $0x130] sm:$0xff]
    %v776 = vld [vmem:[#allocation4 + $0x138] sm:$0xff]
    %v777 = vld [vmem:[#allocation4 + $0x140] sm:$0xff]
    %v778 = vld [vmem:[#allocation4 + $0x148] sm:$0xff]
    %v779 = vld [vmem:[#allocation4 + $0x150] sm:$0xff]
    %v780 = vld [vmem:[#allocation4 + $0x158] sm:$0xff]
    %v781 = vld [vmem:[#allocation4 + $0x160] sm:$0xff]
    %v782 = vld [vmem:[#allocation4 + $0x168] sm:$0xff]
    %v783 = vld [vmem:[#allocation4 + $0x170] sm:$0xff]
    %v784 = vld [vmem:[#allocation4 + $0x178] sm:$0xff]
    %v785 = vld [vmem:[#allocation4 + $0x180] sm:$0xff]
    %v786 = vld [vmem:[#allocation4 + $0x188] sm:$0xff]
    %v787 = vld [vmem:[#allocation4 + $0x190] sm:$0xff]
    %v788 = vld [vmem:[#allocation4 + $0x198] sm:$0xff]
    %v789 = vld [vmem:[#allocation4 + $0x1a0] sm:$0xff]
    %v790 = vld [vmem:[#allocation4 + $0x1a8] sm:$0xff]
    %v791 = vld [vmem:[#allocation4 + $0x1b0] sm:$0xff]
    %v792 = vld [vmem:[#allocation4 + $0x1b8] sm:$0xff]
    %v793 = vld [vmem:[#allocation4 + $0x1c0] sm:$0xff]
    %v794 = vld [vmem:[#allocation4 + $0x1c8] sm:$0xff]
    %v795 = vld [vmem:[#allocation4 + $0x1d0] sm:$0xff]
    %v796 = vld [vmem:[#allocation4 + $0x1d8] sm:$0xff]
    %v797 = vld [vmem:[#allocation4 + $0x1e0] sm:$0xff]
    %v798 = vld [vmem:[#allocation4 + $0x1e8] sm:$0xff]
    %v799 = vld [vmem:[#allocation4 + $0x1f0] sm:$0xff]
    %v800 = vld [vmem:[#allocation4 + $0x1f8] sm:$0xff]
    %v801 = vld [vmem:[#allocation4 + $0x200] sm:$0xff]
    %v802 = vld [vmem:[#allocation4 + $0x208] sm:$0xff]
    %v803 = vld [vmem:[#allocation4 + $0x210] sm:$0xff]
    %v804 = vld [vmem:[#allocation4 + $0x218] sm:$0xff]
    %v805 = vld [vmem:[#allocation4 + $0x220] sm:$0xff]
    %v806 = vld [vmem:[#allocation4 + $0x228] sm:$0xff]
    %v807 = vld [vmem:[#allocation4 + $0x230] sm:$0xff]
    %v808 = vld [vmem:[#allocation4 + $0x238] sm:$0xff]
    %v809 = vld [vmem:[#allocation4 + $0x240] sm:$0xff]
    %v810 = vld [vmem:[#allocation4 + $0x248] sm:$0xff]
    %v811 = vld [vmem:[#allocation4 + $0x250] sm:$0xff]
    %v812 = vld [vmem:[#allocation4 + $0x258] sm:$0xff]
    %v813 = vld [vmem:[#allocation4 + $0x260] sm:$0xff]
    %v814 = vld [vmem:[#allocation4 + $0x268] sm:$0xff]
    %v815 = vld [vmem:[#allocation4 + $0x270] sm:$0xff]
    %v816 = vld [vmem:[#allocation4 + $0x278] sm:$0xff]
    %v817 = vld [vmem:[#allocation4 + $0x280] sm:$0xff]
    %v818 = vld [vmem:[#allocation4 + $0x288] sm:$0xff]
    %v819 = vld [vmem:[#allocation4 + $0x290] sm:$0xff]
    %v820 = vld [vmem:[#allocation4 + $0x298] sm:$0xff]
    %v821 = vld [vmem:[#allocation4 + $0x2a0] sm:$0xff]
    %v822 = vld [vmem:[#allocation4 + $0x2a8] sm:$0xff]
    %v823 = vld [vmem:[#allocation4 + $0x2b0] sm:$0xff]
    %v824 = vld [vmem:[#allocation4 + $0x2b8] sm:$0xff]
    %v825 = vld [vmem:[#allocation4 + $0x2c0] sm:$0xff]
    %v826 = vld [vmem:[#allocation4 + $0x2c8] sm:$0xff]
    %v827 = vld [vmem:[#allocation4 + $0x2d0] sm:$0xff]
    %v828 = vld [vmem:[#allocation4 + $0x2d8] sm:$0xff]
    %v829 = vld [vmem:[#allocation4 + $0x2e0] sm:$0xff]
    %v830 = vld [vmem:[#allocation4 + $0x2e8] sm:$0xff]
    %v831 = vld [vmem:[#allocation4 + $0x2f0] sm:$0xff]
    %v832 = vld [vmem:[#allocation4 + $0x2f8] sm:$0xff]
    %v833 = vld [vmem:[#allocation4 + $0x300] sm:$0xff]
    %v834 = vld [vmem:[#allocation4 + $0x308] sm:$0xff]
    %v835 = vld [vmem:[#allocation4 + $0x310] sm:$0xff]
    %v836 = vld [vmem:[#allocation4 + $0x318] sm:$0xff]
    %v837 = vld [vmem:[#allocation4 + $0x320] sm:$0xff]
    %v838 = vld [vmem:[#allocation4 + $0x328] sm:$0xff]
    %v839 = vld [vmem:[#allocation4 + $0x330] sm:$0xff]
    %v840 = vld [vmem:[#allocation4 + $0x338] sm:$0xff]
    %v841 = vld [vmem:[#allocation4 + $0x340] sm:$0xff]
    %v842 = vld [vmem:[#allocation4 + $0x348] sm:$0xff]
    %v843 = vld [vmem:[#allocation4 + $0x350] sm:$0xff]
    %v844 = vld [vmem:[#allocation4 + $0x358] sm:$0xff]
    %v845 = vld [vmem:[#allocation4 + $0x360] sm:$0xff]
    %v846 = vld [vmem:[#allocation4 + $0x368] sm:$0xff]
    %v847 = vld [vmem:[#allocation4 + $0x370] sm:$0xff]
    %v848 = vld [vmem:[#allocation4 + $0x378] sm:$0xff]
    %v849 = vld [vmem:[#allocation4 + $0x380] sm:$0xff]
    %v850 = vld [vmem:[#allocation4 + $0x388] sm:$0xff]
    %v851 = vld [vmem:[#allocation4 + $0x390] sm:$0xff]
    %v852 = vld [vmem:[#allocation4 + $0x398] sm:$0xff]
    %v853 = vld [vmem:[#allocation4 + $0x3a0] sm:$0xff]
    %v854 = vld [vmem:[#allocation4 + $0x3a8] sm:$0xff]
    %v855 = vld [vmem:[#allocation4 + $0x3b0] sm:$0xff]
    %v856 = vld [vmem:[#allocation4 + $0x3b8] sm:$0xff]
    %v857 = vld [vmem:[#allocation4 + $0x3c0] sm:$0xff]
    %v858 = vld [vmem:[#allocation4 + $0x3c8] sm:$0xff]
    %v859 = vld [vmem:[#allocation4 + $0x3d0] sm:$0xff]
    %v860 = vld [vmem:[#allocation4 + $0x3d8] sm:$0xff]
    %v861 = vld [vmem:[#allocation4 + $0x3e0] sm:$0xff]
    %v862 = vld [vmem:[#allocation4 + $0x3e8] sm:$0xff]
    %v863 = vld [vmem:[#allocation4 + $0x3f0] sm:$0xff]
    %v864 = vld [vmem:[#allocation4 + $0x3f8] sm:$0xff]
    %v865 = vld [vmem:[%s5] sm:$0xf]
    %v867 = vperm.slane %v865, 0
    %v868 = vperm.slane %v865, 1
    %v869 = vperm.slane %v865, 2
    %v870 = vperm.slane %v865, 3
    %v1003 = vunpack.c.l.b16 %v737
    %v1004 = vunpack.c.h.b16 %v737
    %v1005 = vunpack.c.l.b16 %v738
    %v1006 = vunpack.c.h.b16 %v738
    %v1007 = vunpack.c.l.b16 %v739
    %v1008 = vunpack.c.h.b16 %v739
    %v1009 = vunpack.c.l.b16 %v740
    %v1010 = vunpack.c.h.b16 %v740
    %v1011 = vunpack.c.l.b16 %v741
    %v1012 = vunpack.c.h.b16 %v741
    %v1013 = vunpack.c.l.b16 %v742
    %v1014 = vunpack.c.h.b16 %v742
    %v1015 = vunpack.c.l.b16 %v743
    %v1016 = vunpack.c.h.b16 %v743
    %v1017 = vunpack.c.l.b16 %v744
    %v1018 = vunpack.c.h.b16 %v744
    %v1019 = vunpack.c.l.b16 %v745
    %v1020 = vunpack.c.h.b16 %v745
    %v1021 = vunpack.c.l.b16 %v746
    %v1022 = vunpack.c.h.b16 %v746
    %v1023 = vunpack.c.l.b16 %v747
    %v1024 = vunpack.c.h.b16 %v747
    %v1025 = vunpack.c.l.b16 %v748
    %v1026 = vunpack.c.h.b16 %v748
    %v1027 = vunpack.c.l.b16 %v749
    %v1028 = vunpack.c.h.b16 %v749
    %v1029 = vunpack.c.l.b16 %v750
    %v1030 = vunpack.c.h.b16 %v750
    %v1031 = vunpack.c.l.b16 %v751
    %v1032 = vunpack.c.h.b16 %v751
    %v1033 = vunpack.c.l.b16 %v752
    %v1034 = vunpack.c.h.b16 %v752
    %v1035 = vunpack.c.l.b16 %v753
    %v1036 = vunpack.c.h.b16 %v753
    %v1037 = vunpack.c.l.b16 %v754
    %v1038 = vunpack.c.h.b16 %v754
    %v1039 = vunpack.c.l.b16 %v755
    %v1040 = vunpack.c.h.b16 %v755
    %v1041 = vunpack.c.l.b16 %v756
    %v1042 = vunpack.c.h.b16 %v756
    %v1043 = vunpack.c.l.b16 %v757
    %v1044 = vunpack.c.h.b16 %v757
    %v1045 = vunpack.c.l.b16 %v758
    %v1046 = vunpack.c.h.b16 %v758
    %v1047 = vunpack.c.l.b16 %v759
    %v1048 = vunpack.c.h.b16 %v759
    %v1049 = vunpack.c.l.b16 %v760
    %v1050 = vunpack.c.h.b16 %v760
    %v1051 = vunpack.c.l.b16 %v761
    %v1052 = vunpack.c.h.b16 %v761
    %v1053 = vunpack.c.l.b16 %v762
    %v1054 = vunpack.c.h.b16 %v762
    %v1055 = vunpack.c.l.b16 %v763
    %v1056 = vunpack.c.h.b16 %v763
    %v1057 = vunpack.c.l.b16 %v764
    %v1058 = vunpack.c.h.b16 %v764
    %v1059 = vunpack.c.l.b16 %v765
    %v1060 = vunpack.c.h.b16 %v765
    %v1061 = vunpack.c.l.b16 %v766
    %v1062 = vunpack.c.h.b16 %v766
    %v1063 = vunpack.c.l.b16 %v767
    %v1064 = vunpack.c.h.b16 %v767
    %v1065 = vunpack.c.l.b16 %v768
    %v1066 = vunpack.c.h.b16 %v768
    %v1067 = vunpack.c.l.b16 %v769
    %v1068 = vunpack.c.h.b16 %v769
    %v1069 = vunpack.c.l.b16 %v770
    %v1070 = vunpack.c.h.b16 %v770
    %v1071 = vunpack.c.l.b16 %v771
    %v1072 = vunpack.c.h.b16 %v771
    %v1073 = vunpack.c.l.b16 %v772
    %v1074 = vunpack.c.h.b16 %v772
    %v1075 = vunpack.c.l.b16 %v773
    %v1076 = vunpack.c.h.b16 %v773
    %v1077 = vunpack.c.l.b16 %v774
    %v1078 = vunpack.c.h.b16 %v774
    %v1079 = vunpack.c.l.b16 %v775
    %v1080 = vunpack.c.h.b16 %v775
    %v1081 = vunpack.c.l.b16 %v776
    %v1082 = vunpack.c.h.b16 %v776
    %v1083 = vunpack.c.l.b16 %v777
    %v1084 = vunpack.c.h.b16 %v777
    %v1085 = vunpack.c.l.b16 %v778
    %v1086 = vunpack.c.h.b16 %v778
    %v1087 = vunpack.c.l.b16 %v779
    %v1088 = vunpack.c.h.b16 %v779
    %v1089 = vunpack.c.l.b16 %v780
    %v1090 = vunpack.c.h.b16 %v780
    %v1091 = vunpack.c.l.b16 %v781
    %v1092 = vunpack.c.h.b16 %v781
    %v1093 = vunpack.c.l.b16 %v782
    %v1094 = vunpack.c.h.b16 %v782
    %v1095 = vunpack.c.l.b16 %v783
    %v1096 = vunpack.c.h.b16 %v783
    %v1097 = vunpack.c.l.b16 %v784
    %v1098 = vunpack.c.h.b16 %v784
    %v1099 = vunpack.c.l.b16 %v785
    %v1100 = vunpack.c.h.b16 %v785
    %v1101 = vunpack.c.l.b16 %v786
    %v1102 = vunpack.c.h.b16 %v786
    %v1103 = vunpack.c.l.b16 %v787
    %v1104 = vunpack.c.h.b16 %v787
    %v1105 = vunpack.c.l.b16 %v788
    %v1106 = vunpack.c.h.b16 %v788
    %v1107 = vunpack.c.l.b16 %v789
    %v1108 = vunpack.c.h.b16 %v789
    %v1109 = vunpack.c.l.b16 %v790
    %v1110 = vunpack.c.h.b16 %v790
    %v1111 = vunpack.c.l.b16 %v791
    %v1112 = vunpack.c.h.b16 %v791
    %v1113 = vunpack.c.l.b16 %v792
    %v1114 = vunpack.c.h.b16 %v792
    %v1115 = vunpack.c.l.b16 %v793
    %v1116 = vunpack.c.h.b16 %v793
    %v1117 = vunpack.c.l.b16 %v794
    %v1118 = vunpack.c.h.b16 %v794
    %v1119 = vunpack.c.l.b16 %v795
    %v1120 = vunpack.c.h.b16 %v795
    %v1121 = vunpack.c.l.b16 %v796
    %v1122 = vunpack.c.h.b16 %v796
    %v1123 = vunpack.c.l.b16 %v797
    %v1124 = vunpack.c.h.b16 %v797
    %v1125 = vunpack.c.l.b16 %v798
    %v1126 = vunpack.c.h.b16 %v798
    %v1127 = vunpack.c.l.b16 %v799
    %v1128 = vunpack.c.h.b16 %v799
    %v1129 = vunpack.c.l.b16 %v800
    %v1130 = vunpack.c.h.b16 %v800
    %v1131 = vunpack.c.l.b16 %v801
    %v1132 = vunpack.c.h.b16 %v801
    %v1133 = vunpack.c.l.b16 %v802
    %v1134 = vunpack.c.h.b16 %v802
    %v1135 = vunpack.c.l.b16 %v803
    %v1136 = vunpack.c.h.b16 %v803
    %v1137 = vunpack.c.l.b16 %v804
    %v1138 = vunpack.c.h.b16 %v804
    %v1139 = vunpack.c.l.b16 %v805
    %v1140 = vunpack.c.h.b16 %v805
    %v1141 = vunpack.c.l.b16 %v806
    %v1142 = vunpack.c.h.b16 %v806
    %v1143 = vunpack.c.l.b16 %v807
    %v1144 = vunpack.c.h.b16 %v807
    %v1145 = vunpack.c.l.b16 %v808
    %v1146 = vunpack.c.h.b16 %v808
    %v1147 = vunpack.c.l.b16 %v809
    %v1148 = vunpack.c.h.b16 %v809
    %v1149 = vunpack.c.l.b16 %v810
    %v1150 = vunpack.c.h.b16 %v810
    %v1151 = vunpack.c.l.b16 %v811
    %v1152 = vunpack.c.h.b16 %v811
    %v1153 = vunpack.c.l.b16 %v812
    %v1154 = vunpack.c.h.b16 %v812
    %v1155 = vunpack.c.l.b16 %v813
    %v1156 = vunpack.c.h.b16 %v813
    %v1157 = vunpack.c.l.b16 %v814
    %v1158 = vunpack.c.h.b16 %v814
    %v1159 = vunpack.c.l.b16 %v815
    %v1160 = vunpack.c.h.b16 %v815
    %v1161 = vunpack.c.l.b16 %v816
    %v1162 = vunpack.c.h.b16 %v816
    %v1163 = vunpack.c.l.b16 %v817
    %v1164 = vunpack.c.h.b16 %v817
    %v1165 = vunpack.c.l.b16 %v818
    %v1166 = vunpack.c.h.b16 %v818
    %v1167 = vunpack.c.l.b16 %v819
    %v1168 = vunpack.c.h.b16 %v819
    %v1169 = vunpack.c.l.b16 %v820
    %v1170 = vunpack.c.h.b16 %v820
    %v1171 = vunpack.c.l.b16 %v821
    %v1172 = vunpack.c.h.b16 %v821
    %v1173 = vunpack.c.l.b16 %v822
    %v1174 = vunpack.c.h.b16 %v822
    %v1175 = vunpack.c.l.b16 %v823
    %v1176 = vunpack.c.h.b16 %v823
    %v1177 = vunpack.c.l.b16 %v824
    %v1178 = vunpack.c.h.b16 %v824
    %v1179 = vunpack.c.l.b16 %v825
    %v1180 = vunpack.c.h.b16 %v825
    %v1181 = vunpack.c.l.b16 %v826
    %v1182 = vunpack.c.h.b16 %v826
    %v1183 = vunpack.c.l.b16 %v827
    %v1184 = vunpack.c.h.b16 %v827
    %v1185 = vunpack.c.l.b16 %v828
    %v1186 = vunpack.c.h.b16 %v828
    %v1187 = vunpack.c.l.b16 %v829
    %v1188 = vunpack.c.h.b16 %v829
    %v1189 = vunpack.c.l.b16 %v830
    %v1190 = vunpack.c.h.b16 %v830
    %v1191 = vunpack.c.l.b16 %v831
    %v1192 = vunpack.c.h.b16 %v831
    %v1193 = vunpack.c.l.b16 %v832
    %v1194 = vunpack.c.h.b16 %v832
    %v1195 = vunpack.c.l.b16 %v833
    %v1196 = vunpack.c.h.b16 %v833
    %v1197 = vunpack.c.l.b16 %v834
    %v1198 = vunpack.c.h.b16 %v834
    %v1199 = vunpack.c.l.b16 %v835
    %v1200 = vunpack.c.h.b16 %v835
    %v1201 = vunpack.c.l.b16 %v836
    %v1202 = vunpack.c.h.b16 %v836
    %v1203 = vunpack.c.l.b16 %v837
    %v1204 = vunpack.c.h.b16 %v837
    %v1205 = vunpack.c.l.b16 %v838
    %v1206 = vunpack.c.h.b16 %v838
    %v1207 = vunpack.c.l.b16 %v839
    %v1208 = vunpack.c.h.b16 %v839
    %v1209 = vunpack.c.l.b16 %v840
    %v1210 = vunpack.c.h.b16 %v840
    %v1211 = vunpack.c.l.b16 %v841
    %v1212 = vunpack.c.h.b16 %v841
    %v1213 = vunpack.c.l.b16 %v842
    %v1214 = vunpack.c.h.b16 %v842
    %v1215 = vunpack.c.l.b16 %v843
    %v1216 = vunpack.c.h.b16 %v843
    %v1217 = vunpack.c.l.b16 %v844
    %v1218 = vunpack.c.h.b16 %v844
    %v1219 = vunpack.c.l.b16 %v845
    %v1220 = vunpack.c.h.b16 %v845
    %v1221 = vunpack.c.l.b16 %v846
    %v1222 = vunpack.c.h.b16 %v846
    %v1223 = vunpack.c.l.b16 %v847
    %v1224 = vunpack.c.h.b16 %v847
    %v1225 = vunpack.c.l.b16 %v848
    %v1226 = vunpack.c.h.b16 %v848
    %v1227 = vunpack.c.l.b16 %v849
    %v1228 = vunpack.c.h.b16 %v849
    %v1229 = vunpack.c.l.b16 %v850
    %v1230 = vunpack.c.h.b16 %v850
    %v1231 = vunpack.c.l.b16 %v851
    %v1232 = vunpack.c.h.b16 %v851
    %v1233 = vunpack.c.l.b16 %v852
    %v1234 = vunpack.c.h.b16 %v852
    %v1235 = vunpack.c.l.b16 %v853
    %v1236 = vunpack.c.h.b16 %v853
    %v1237 = vunpack.c.l.b16 %v854
    %v1238 = vunpack.c.h.b16 %v854
    %v1239 = vunpack.c.l.b16 %v855
    %v1240 = vunpack.c.h.b16 %v855
    %v1241 = vunpack.c.l.b16 %v856
    %v1242 = vunpack.c.h.b16 %v856
    %v1243 = vunpack.c.l.b16 %v857
    %v1244 = vunpack.c.h.b16 %v857
    %v1245 = vunpack.c.l.b16 %v858
    %v1246 = vunpack.c.h.b16 %v858
    %v1247 = vunpack.c.l.b16 %v859
    %v1248 = vunpack.c.h.b16 %v859
    %v1249 = vunpack.c.l.b16 %v860
    %v1250 = vunpack.c.h.b16 %v860
    %v1251 = vunpack.c.l.b16 %v861
    %v1252 = vunpack.c.h.b16 %v861
    %v1253 = vunpack.c.l.b16 %v862
    %v1254 = vunpack.c.h.b16 %v862
    %v1255 = vunpack.c.l.b16 %v863
    %v1256 = vunpack.c.h.b16 %v863
    %v1257 = vunpack.c.l.b16 %v864
    %v1258 = vunpack.c.h.b16 %v864
    %v1259 = vpack.c.b16 %v1007, %v1003
    %v1260 = vpack.c.b16 %v1008, %v1004
    %v1261 = vpack.c.b16 %v1009, %v1005
    %v1262 = vpack.c.b16 %v1010, %v1006
    %v1263 = vpack.c.b16 %v1015, %v1011
    %v1264 = vpack.c.b16 %v1016, %v1012
    %v1265 = vpack.c.b16 %v1017, %v1013
    %v1266 = vpack.c.b16 %v1018, %v1014
    %v1267 = vpack.c.b16 %v1023, %v1019
    %v1268 = vpack.c.b16 %v1024, %v1020
    %v1269 = vpack.c.b16 %v1025, %v1021
    %v1270 = vpack.c.b16 %v1026, %v1022
    %v1271 = vpack.c.b16 %v1031, %v1027
    %v1272 = vpack.c.b16 %v1032, %v1028
    %v1273 = vpack.c.b16 %v1033, %v1029
    %v1274 = vpack.c.b16 %v1034, %v1030
    %v1275 = vpack.c.b16 %v1039, %v1035
    %v1276 = vpack.c.b16 %v1040, %v1036
    %v1277 = vpack.c.b16 %v1041, %v1037
    %v1278 = vpack.c.b16 %v1042, %v1038
    %v1279 = vpack.c.b16 %v1047, %v1043
    %v1280 = vpack.c.b16 %v1048, %v1044
    %v1281 = vpack.c.b16 %v1049, %v1045
    %v1282 = vpack.c.b16 %v1050, %v1046
    %v1283 = vpack.c.b16 %v1055, %v1051
    %v1284 = vpack.c.b16 %v1056, %v1052
    %v1285 = vpack.c.b16 %v1057, %v1053
    %v1286 = vpack.c.b16 %v1058, %v1054
    %v1287 = vpack.c.b16 %v1063, %v1059
    %v1288 = vpack.c.b16 %v1064, %v1060
    %v1289 = vpack.c.b16 %v1065, %v1061
    %v1290 = vpack.c.b16 %v1066, %v1062
    %v1291 = vpack.c.b16 %v1071, %v1067
    %v1292 = vpack.c.b16 %v1072, %v1068
    %v1293 = vpack.c.b16 %v1073, %v1069
    %v1294 = vpack.c.b16 %v1074, %v1070
    %v1295 = vpack.c.b16 %v1079, %v1075
    %v1296 = vpack.c.b16 %v1080, %v1076
    %v1297 = vpack.c.b16 %v1081, %v1077
    %v1298 = vpack.c.b16 %v1082, %v1078
    %v1299 = vpack.c.b16 %v1087, %v1083
    %v1300 = vpack.c.b16 %v1088, %v1084
    %v1301 = vpack.c.b16 %v1089, %v1085
    %v1302 = vpack.c.b16 %v1090, %v1086
    %v1303 = vpack.c.b16 %v1095, %v1091
    %v1304 = vpack.c.b16 %v1096, %v1092
    %v1305 = vpack.c.b16 %v1097, %v1093
    %v1306 = vpack.c.b16 %v1098, %v1094
    %v1307 = vpack.c.b16 %v1103, %v1099
    %v1308 = vpack.c.b16 %v1104, %v1100
    %v1309 = vpack.c.b16 %v1105, %v1101
    %v1310 = vpack.c.b16 %v1106, %v1102
    %v1311 = vpack.c.b16 %v1111, %v1107
    %v1312 = vpack.c.b16 %v1112, %v1108
    %v1313 = vpack.c.b16 %v1113, %v1109
    %v1314 = vpack.c.b16 %v1114, %v1110
    %v1315 = vpack.c.b16 %v1119, %v1115
    %v1316 = vpack.c.b16 %v1120, %v1116
    %v1317 = vpack.c.b16 %v1121, %v1117
    %v1318 = vpack.c.b16 %v1122, %v1118
    %v1319 = vpack.c.b16 %v1127, %v1123
    %v1320 = vpack.c.b16 %v1128, %v1124
    %v1321 = vpack.c.b16 %v1129, %v1125
    %v1322 = vpack.c.b16 %v1130, %v1126
    %v1323 = vpack.c.b16 %v1135, %v1131
    %v1324 = vpack.c.b16 %v1136, %v1132
    %v1325 = vpack.c.b16 %v1137, %v1133
    %v1326 = vpack.c.b16 %v1138, %v1134
    %v1327 = vpack.c.b16 %v1143, %v1139
    %v1328 = vpack.c.b16 %v1144, %v1140
    %v1329 = vpack.c.b16 %v1145, %v1141
    %v1330 = vpack.c.b16 %v1146, %v1142
    %v1331 = vpack.c.b16 %v1151, %v1147
    %v1332 = vpack.c.b16 %v1152, %v1148
    %v1333 = vpack.c.b16 %v1153, %v1149
    %v1334 = vpack.c.b16 %v1154, %v1150
    %v1335 = vpack.c.b16 %v1159, %v1155
    %v1336 = vpack.c.b16 %v1160, %v1156
    %v1337 = vpack.c.b16 %v1161, %v1157
    %v1338 = vpack.c.b16 %v1162, %v1158
    %v1339 = vpack.c.b16 %v1167, %v1163
    %v1340 = vpack.c.b16 %v1168, %v1164
    %v1341 = vpack.c.b16 %v1169, %v1165
    %v1342 = vpack.c.b16 %v1170, %v1166
    %v1343 = vpack.c.b16 %v1175, %v1171
    %v1344 = vpack.c.b16 %v1176, %v1172
    %v1345 = vpack.c.b16 %v1177, %v1173
    %v1346 = vpack.c.b16 %v1178, %v1174
    %v1347 = vpack.c.b16 %v1183, %v1179
    %v1348 = vpack.c.b16 %v1184, %v1180
    %v1349 = vpack.c.b16 %v1185, %v1181
    %v1350 = vpack.c.b16 %v1186, %v1182
    %v1351 = vpack.c.b16 %v1191, %v1187
    %v1352 = vpack.c.b16 %v1192, %v1188
    %v1353 = vpack.c.b16 %v1193, %v1189
    %v1354 = vpack.c.b16 %v1194, %v1190
    %v1355 = vpack.c.b16 %v1199, %v1195
    %v1356 = vpack.c.b16 %v1200, %v1196
    %v1357 = vpack.c.b16 %v1201, %v1197
    %v1358 = vpack.c.b16 %v1202, %v1198
    %v1359 = vpack.c.b16 %v1207, %v1203
    %v1360 = vpack.c.b16 %v1208, %v1204
    %v1361 = vpack.c.b16 %v1209, %v1205
    %v1362 = vpack.c.b16 %v1210, %v1206
    %v1363 = vpack.c.b16 %v1215, %v1211
    %v1364 = vpack.c.b16 %v1216, %v1212
    %v1365 = vpack.c.b16 %v1217, %v1213
    %v1366 = vpack.c.b16 %v1218, %v1214
    %v1367 = vpack.c.b16 %v1223, %v1219
    %v1368 = vpack.c.b16 %v1224, %v1220
    %v1369 = vpack.c.b16 %v1225, %v1221
    %v1370 = vpack.c.b16 %v1226, %v1222
    %v1371 = vpack.c.b16 %v1231, %v1227
    %v1372 = vpack.c.b16 %v1232, %v1228
    %v1373 = vpack.c.b16 %v1233, %v1229
    %v1374 = vpack.c.b16 %v1234, %v1230
    %v1375 = vpack.c.b16 %v1239, %v1235
    %v1376 = vpack.c.b16 %v1240, %v1236
    %v1377 = vpack.c.b16 %v1241, %v1237
    %v1378 = vpack.c.b16 %v1242, %v1238
    %v1379 = vpack.c.b16 %v1247, %v1243
    %v1380 = vpack.c.b16 %v1248, %v1244
    %v1381 = vpack.c.b16 %v1249, %v1245
    %v1382 = vpack.c.b16 %v1250, %v1246
    %v1383 = vpack.c.b16 %v1255, %v1251
    %v1384 = vpack.c.b16 %v1256, %v1252
    %v1385 = vpack.c.b16 %v1257, %v1253
    %v1386 = vpack.c.b16 %v1258, %v1254
    %1515 = vmatpush.bf16.msra.mxu0 %v1287
    %1516 = vmatpush.bf16.msra.mxu0 %v1283
    %1517 = vmatpush.bf16.msra.mxu0 %v1279
    %1518 = vmatpush.bf16.msra.mxu0 %v1275
    %1519 = vmatpush.bf16.msra.mxu0 %v1271
    %1520 = vmatpush.bf16.msra.mxu0 %v1267
    %1521 = vmatpush.bf16.msra.mxu0 %v1263
    %1522 = vmatpush.bf16.msra.mxu0 %v1259
    %1523 = vmatmul.bf16.gmra.mxu0 %v733
    %v1524 = vpop.f32.mrf.mxu0
    %v1525 = vadd.f32 %v867, %v1524
    %v1526 = vpop.f32.mrf.mxu0
    %v1527 = vadd.f32 %v867, %v1526
    %1528 = vdwg.mxu0
    %1529 = vmatpush.bf16.msra.mxu0 %v1319
    %1530 = vmatpush.bf16.msra.mxu0 %v1315
    %1531 = vmatpush.bf16.msra.mxu0 %v1311
    %1532 = vmatpush.bf16.msra.mxu0 %v1307
    %1533 = vmatpush.bf16.msra.mxu0 %v1303
    %1534 = vmatpush.bf16.msra.mxu0 %v1299
    %1535 = vmatpush.bf16.msra.mxu0 %v1295
    %1536 = vmatpush.bf16.msra.mxu0 %v1291
    %1537 = vmatmul.bf16.gmra.mxu0 %v734
    %v1538 = vpop.f32.mrf.mxu0
    %v1539 = vadd.f32 %v1525, %v1538
    %v1540 = vpop.f32.mrf.mxu0
    %v1541 = vadd.f32 %v1527, %v1540
    %1542 = vdwg.mxu0
    %1543 = vmatpush.bf16.msra.mxu0 %v1351
    %1544 = vmatpush.bf16.msra.mxu0 %v1347
    %1545 = vmatpush.bf16.msra.mxu0 %v1343
    %1546 = vmatpush.bf16.msra.mxu0 %v1339
    %1547 = vmatpush.bf16.msra.mxu0 %v1335
    %1548 = vmatpush.bf16.msra.mxu0 %v1331
    %1549 = vmatpush.bf16.msra.mxu0 %v1327
    %1550 = vmatpush.bf16.msra.mxu0 %v1323
    %1551 = vmatmul.bf16.gmra.mxu0 %v735
    %v1552 = vpop.f32.mrf.mxu0
    %v1553 = vadd.f32 %v1539, %v1552
    %v1554 = vpop.f32.mrf.mxu0
    %v1555 = vadd.f32 %v1541, %v1554
    %1556 = vdwg.mxu0
    %1557 = vmatpush.bf16.msra.mxu0 %v1383
    %1558 = vmatpush.bf16.msra.mxu0 %v1379
    %1559 = vmatpush.bf16.msra.mxu0 %v1375
    %1560 = vmatpush.bf16.msra.mxu0 %v1371
    %1561 = vmatpush.bf16.msra.mxu0 %v1367
    %1562 = vmatpush.bf16.msra.mxu0 %v1363
    %1563 = vmatpush.bf16.msra.mxu0 %v1359
    %1564 = vmatpush.bf16.msra.mxu0 %v1355
    %1565 = vmatmul.bf16.gmra.mxu0 %v736
    %v1566 = vpop.f32.mrf.mxu0
    %v1567 = vadd.f32 %v1553, %v1566
    %v1568 = vpop.f32.mrf.mxu0
    %v1569 = vadd.f32 %v1555, %v1568
    %1570 = vdwg.mxu0
    %1571 = vmatpush.bf16.msra.mxu0 %v1288
    %1572 = vmatpush.bf16.msra.mxu0 %v1284
    %1573 = vmatpush.bf16.msra.mxu0 %v1280
    %1574 = vmatpush.bf16.msra.mxu0 %v1276
    %1575 = vmatpush.bf16.msra.mxu0 %v1272
    %1576 = vmatpush.bf16.msra.mxu0 %v1268
    %1577 = vmatpush.bf16.msra.mxu0 %v1264
    %1578 = vmatpush.bf16.msra.mxu0 %v1260
    %1579 = vmatmul.bf16.gmra.mxu0 %v733
    %v1580 = vpop.f32.mrf.mxu0
    %v1581 = vadd.f32 %v868, %v1580
    %v1582 = vpop.f32.mrf.mxu0
    %v1583 = vadd.f32 %v868, %v1582
    %1584 = vdwg.mxu0
    %1585 = vmatpush.bf16.msra.mxu0 %v1320
    %1586 = vmatpush.bf16.msra.mxu0 %v1316
    %1587 = vmatpush.bf16.msra.mxu0 %v1312
    %1588 = vmatpush.bf16.msra.mxu0 %v1308
    %1589 = vmatpush.bf16.msra.mxu0 %v1304
    %1590 = vmatpush.bf16.msra.mxu0 %v1300
    %1591 = vmatpush.bf16.msra.mxu0 %v1296
    %1592 = vmatpush.bf16.msra.mxu0 %v1292
    %1593 = vmatmul.bf16.gmra.mxu0 %v734
    %v1594 = vpop.f32.mrf.mxu0
    %v1595 = vadd.f32 %v1581, %v1594
    %v1596 = vpop.f32.mrf.mxu0
    %v1597 = vadd.f32 %v1583, %v1596
    %1598 = vdwg.mxu0
    %1599 = vmatpush.bf16.msra.mxu0 %v1352
    %1600 = vmatpush.bf16.msra.mxu0 %v1348
    %1601 = vmatpush.bf16.msra.mxu0 %v1344
    %1602 = vmatpush.bf16.msra.mxu0 %v1340
    %1603 = vmatpush.bf16.msra.mxu0 %v1336
    %1604 = vmatpush.bf16.msra.mxu0 %v1332
    %1605 = vmatpush.bf16.msra.mxu0 %v1328
    %1606 = vmatpush.bf16.msra.mxu0 %v1324
    %1607 = vmatmul.bf16.gmra.mxu0 %v735
    %v1608 = vpop.f32.mrf.mxu0
    %v1609 = vadd.f32 %v1595, %v1608
    %v1610 = vpop.f32.mrf.mxu0
    %v1611 = vadd.f32 %v1597, %v1610
    %1612 = vdwg.mxu0
    %1613 = vmatpush.bf16.msra.mxu0 %v1384
    %1614 = vmatpush.bf16.msra.mxu0 %v1380
    %1615 = vmatpush.bf16.msra.mxu0 %v1376
    %1616 = vmatpush.bf16.msra.mxu0 %v1372
    %1617 = vmatpush.bf16.msra.mxu0 %v1368
    %1618 = vmatpush.bf16.msra.mxu0 %v1364
    %1619 = vmatpush.bf16.msra.mxu0 %v1360
    %1620 = vmatpush.bf16.msra.mxu0 %v1356
    %1621 = vmatmul.bf16.gmra.mxu0 %v736
    %v1622 = vpop.f32.mrf.mxu0
    %v1623 = vadd.f32 %v1609, %v1622
    %v1624 = vpop.f32.mrf.mxu0
    %v1625 = vadd.f32 %v1611, %v1624
    %1626 = vdwg.mxu0
    %1627 = vmatpush.bf16.msra.mxu0 %v1289
    %1628 = vmatpush.bf16.msra.mxu0 %v1285
    %1629 = vmatpush.bf16.msra.mxu0 %v1281
    %1630 = vmatpush.bf16.msra.mxu0 %v1277
    %1631 = vmatpush.bf16.msra.mxu0 %v1273
    %1632 = vmatpush.bf16.msra.mxu0 %v1269
    %1633 = vmatpush.bf16.msra.mxu0 %v1265
    %1634 = vmatpush.bf16.msra.mxu0 %v1261
    %1635 = vmatmul.bf16.gmra.mxu0 %v733
    %v1636 = vpop.f32.mrf.mxu0
    %v1637 = vadd.f32 %v869, %v1636
    %v1638 = vpop.f32.mrf.mxu0
    %v1639 = vadd.f32 %v869, %v1638
    %1640 = vdwg.mxu0
    %1641 = vmatpush.bf16.msra.mxu0 %v1321
    %1642 = vmatpush.bf16.msra.mxu0 %v1317
    %1643 = vmatpush.bf16.msra.mxu0 %v1313
    %1644 = vmatpush.bf16.msra.mxu0 %v1309
    %1645 = vmatpush.bf16.msra.mxu0 %v1305
    %1646 = vmatpush.bf16.msra.mxu0 %v1301
    %1647 = vmatpush.bf16.msra.mxu0 %v1297
    %1648 = vmatpush.bf16.msra.mxu0 %v1293
    %1649 = vmatmul.bf16.gmra.mxu0 %v734
    %v1650 = vpop.f32.mrf.mxu0
    %v1651 = vadd.f32 %v1637, %v1650
    %v1652 = vpop.f32.mrf.mxu0
    %v1653 = vadd.f32 %v1639, %v1652
    %1654 = vdwg.mxu0
    %1655 = vmatpush.bf16.msra.mxu0 %v1353
    %1656 = vmatpush.bf16.msra.mxu0 %v1349
    %1657 = vmatpush.bf16.msra.mxu0 %v1345
    %1658 = vmatpush.bf16.msra.mxu0 %v1341
    %1659 = vmatpush.bf16.msra.mxu0 %v1337
    %1660 = vmatpush.bf16.msra.mxu0 %v1333
    %1661 = vmatpush.bf16.msra.mxu0 %v1329
    %1662 = vmatpush.bf16.msra.mxu0 %v1325
    %1663 = vmatmul.bf16.gmra.mxu0 %v735
    %v1664 = vpop.f32.mrf.mxu0
    %v1665 = vadd.f32 %v1651, %v1664
    %v1666 = vpop.f32.mrf.mxu0
    %v1667 = vadd.f32 %v1653, %v1666
    %1668 = vdwg.mxu0
    %1669 = vmatpush.bf16.msra.mxu0 %v1385
    %1670 = vmatpush.bf16.msra.mxu0 %v1381
    %1671 = vmatpush.bf16.msra.mxu0 %v1377
    %1672 = vmatpush.bf16.msra.mxu0 %v1373
    %1673 = vmatpush.bf16.msra.mxu0 %v1369
    %1674 = vmatpush.bf16.msra.mxu0 %v1365
    %1675 = vmatpush.bf16.msra.mxu0 %v1361
    %1676 = vmatpush.bf16.msra.mxu0 %v1357
    %1677 = vmatmul.bf16.gmra.mxu0 %v736
    %v1678 = vpop.f32.mrf.mxu0
    %v1679 = vadd.f32 %v1665, %v1678
    %v1680 = vpop.f32.mrf.mxu0
    %v1681 = vadd.f32 %v1667, %v1680
    %1682 = vdwg.mxu0
    %1683 = vmatpush.bf16.msra.mxu0 %v1290
    %1684 = vmatpush.bf16.msra.mxu0 %v1286
    %1685 = vmatpush.bf16.msra.mxu0 %v1282
    %1686 = vmatpush.bf16.msra.mxu0 %v1278
    %1687 = vmatpush.bf16.msra.mxu0 %v1274
    %1688 = vmatpush.bf16.msra.mxu0 %v1270
    %1689 = vmatpush.bf16.msra.mxu0 %v1266
    %1690 = vmatpush.bf16.msra.mxu0 %v1262
    %1691 = vmatmul.bf16.gmra.mxu0 %v733
    %v1692 = vpop.f32.mrf.mxu0
    %v1693 = vadd.f32 %v870, %v1692
    %v1694 = vpop.f32.mrf.mxu0
    %v1695 = vadd.f32 %v870, %v1694
    %1696 = vdwg.mxu0
    %1697 = vmatpush.bf16.msra.mxu0 %v1322
    %1698 = vmatpush.bf16.msra.mxu0 %v1318
    %1699 = vmatpush.bf16.msra.mxu0 %v1314
    %1700 = vmatpush.bf16.msra.mxu0 %v1310
    %1701 = vmatpush.bf16.msra.mxu0 %v1306
    %1702 = vmatpush.bf16.msra.mxu0 %v1302
    %1703 = vmatpush.bf16.msra.mxu0 %v1298
    %1704 = vmatpush.bf16.msra.mxu0 %v1294
    %1705 = vmatmul.bf16.gmra.mxu0 %v734
    %v1706 = vpop.f32.mrf.mxu0
    %v1707 = vadd.f32 %v1693, %v1706
    %v1708 = vpop.f32.mrf.mxu0
    %v1709 = vadd.f32 %v1695, %v1708
    %1710 = vdwg.mxu0
    %1711 = vmatpush.bf16.msra.mxu0 %v1354
    %1712 = vmatpush.bf16.msra.mxu0 %v1350
    %1713 = vmatpush.bf16.msra.mxu0 %v1346
    %1714 = vmatpush.bf16.msra.mxu0 %v1342
    %1715 = vmatpush.bf16.msra.mxu0 %v1338
    %1716 = vmatpush.bf16.msra.mxu0 %v1334
    %1717 = vmatpush.bf16.msra.mxu0 %v1330
    %1718 = vmatpush.bf16.msra.mxu0 %v1326
    %1719 = vmatmul.bf16.gmra.mxu0 %v735
    %v1720 = vpop.f32.mrf.mxu0
    %v1721 = vadd.f32 %v1707, %v1720
    %v1722 = vpop.f32.mrf.mxu0
    %v1723 = vadd.f32 %v1709, %v1722
    %1724 = vdwg.mxu0
    %1725 = vmatpush.bf16.msra.mxu0 %v1386
    %1726 = vmatpush.bf16.msra.mxu0 %v1382
    %1727 = vmatpush.bf16.msra.mxu0 %v1378
    %1728 = vmatpush.bf16.msra.mxu0 %v1374
    %1729 = vmatpush.bf16.msra.mxu0 %v1370
    %1730 = vmatpush.bf16.msra.mxu0 %v1366
    %1731 = vmatpush.bf16.msra.mxu0 %v1362
    %1732 = vmatpush.bf16.msra.mxu0 %v1358
    %1733 = vmatmul.bf16.gmra.mxu0 %v736
    %v1734 = vpop.f32.mrf.mxu0
    %v1735 = vadd.f32 %v1721, %v1734
    %v1736 = vpop.f32.mrf.mxu0
    %v1737 = vadd.f32 %v1723, %v1736
    %1738 = vdwg.mxu0
    %vm1739 = vcmp.gt.f32.partialorder %v1567, 0.0
    %vm1740 = vcmp.gt.f32.partialorder %v1623, 0.0
    %vm1741 = vcmp.gt.f32.partialorder %v1679, 0.0
    %vm1742 = vcmp.gt.f32.partialorder %v1735, 0.0
    %vm1743 = vcmp.gt.f32.partialorder %v1569, 0.0
    %vm1744 = vcmp.gt.f32.partialorder %v1625, 0.0
    %vm1745 = vcmp.gt.f32.partialorder %v1681, 0.0
    %vm1746 = vcmp.gt.f32.partialorder %v1737, 0.0
    %v1747 = vmul.f32 %v1567, 0.2
    %v1748 = vmul.f32 %v1623, 0.2
    %v1749 = vmul.f32 %v1679, 0.2
    %v1750 = vmul.f32 %v1735, 0.2
    %v1751 = vmul.f32 %v1569, 0.2
    %v1752 = vmul.f32 %v1625, 0.2
    %v1753 = vmul.f32 %v1681, 0.2
    %v1754 = vmul.f32 %v1737, 0.2
    %v1755 = vsel %vm1739, %v1567, %v1747
    %v1756 = vsel %vm1740, %v1623, %v1748
    %v1757 = vsel %vm1741, %v1679, %v1749
    %v1758 = vsel %vm1742, %v1735, %v1750
    %v1759 = vsel %vm1743, %v1569, %v1751
    %v1760 = vsel %vm1744, %v1625, %v1752
    %v1761 = vsel %vm1745, %v1681, %v1753
    %v1762 = vsel %vm1746, %v1737, %v1754
    %v1763 = vpack.c.bf16 %v1759, %v1755
    %v1764 = vpack.c.bf16 %v1760, %v1756
    %v1765 = vpack.c.bf16 %v1761, %v1757
    %v1766 = vpack.c.bf16 %v1762, %v1758
    %v1767 = vld [vmem:[#allocation6] sm:$0xff]
    %v1768 = vld [vmem:[#allocation6 + $0x8] sm:$0xff]
    %v1769 = vld [vmem:[#allocation6 + $0x10] sm:$0xff]
    %v1770 = vld [vmem:[#allocation6 + $0x18] sm:$0xff]
    %v1771 = vld [vmem:[#allocation6 + $0x20] sm:$0xff]
    %v1772 = vld [vmem:[#allocation6 + $0x28] sm:$0xff]
    %v1773 = vld [vmem:[#allocation6 + $0x30] sm:$0xff]
    %v1774 = vld [vmem:[#allocation6 + $0x38] sm:$0xff]
    %v1775 = vld [vmem:[#allocation6 + $0x40] sm:$0xff]
    %v1776 = vld [vmem:[#allocation6 + $0x48] sm:$0xff]
    %v1777 = vld [vmem:[#allocation6 + $0x50] sm:$0xff]
    %v1778 = vld [vmem:[#allocation6 + $0x58] sm:$0xff]
    %v1779 = vld [vmem:[#allocation6 + $0x60] sm:$0xff]
    %v1780 = vld [vmem:[#allocation6 + $0x68] sm:$0xff]
    %v1781 = vld [vmem:[#allocation6 + $0x70] sm:$0xff]
    %v1782 = vld [vmem:[#allocation6 + $0x78] sm:$0xff]
    %v1783 = vld [vmem:[#allocation6 + $0x80] sm:$0xff]
    %v1784 = vld [vmem:[#allocation6 + $0x88] sm:$0xff]
    %v1785 = vld [vmem:[#allocation6 + $0x90] sm:$0xff]
    %v1786 = vld [vmem:[#allocation6 + $0x98] sm:$0xff]
    %v1787 = vld [vmem:[#allocation6 + $0xa0] sm:$0xff]
    %v1788 = vld [vmem:[#allocation6 + $0xa8] sm:$0xff]
    %v1789 = vld [vmem:[#allocation6 + $0xb0] sm:$0xff]
    %v1790 = vld [vmem:[#allocation6 + $0xb8] sm:$0xff]
    %v1791 = vld [vmem:[#allocation6 + $0xc0] sm:$0xff]
    %v1792 = vld [vmem:[#allocation6 + $0xc8] sm:$0xff]
    %v1793 = vld [vmem:[#allocation6 + $0xd0] sm:$0xff]
    %v1794 = vld [vmem:[#allocation6 + $0xd8] sm:$0xff]
    %v1795 = vld [vmem:[#allocation6 + $0xe0] sm:$0xff]
    %v1796 = vld [vmem:[#allocation6 + $0xe8] sm:$0xff]
    %v1797 = vld [vmem:[#allocation6 + $0xf0] sm:$0xff]
    %v1798 = vld [vmem:[#allocation6 + $0xf8] sm:$0xff]
    %v1799 = vld [vmem:[#allocation6 + $0x100] sm:$0xff]
    %v1800 = vld [vmem:[#allocation6 + $0x108] sm:$0xff]
    %v1801 = vld [vmem:[#allocation6 + $0x110] sm:$0xff]
    %v1802 = vld [vmem:[#allocation6 + $0x118] sm:$0xff]
    %v1803 = vld [vmem:[#allocation6 + $0x120] sm:$0xff]
    %v1804 = vld [vmem:[#allocation6 + $0x128] sm:$0xff]
    %v1805 = vld [vmem:[#allocation6 + $0x130] sm:$0xff]
    %v1806 = vld [vmem:[#allocation6 + $0x138] sm:$0xff]
    %v1807 = vld [vmem:[#allocation6 + $0x140] sm:$0xff]
    %v1808 = vld [vmem:[#allocation6 + $0x148] sm:$0xff]
    %v1809 = vld [vmem:[#allocation6 + $0x150] sm:$0xff]
    %v1810 = vld [vmem:[#allocation6 + $0x158] sm:$0xff]
    %v1811 = vld [vmem:[#allocation6 + $0x160] sm:$0xff]
    %v1812 = vld [vmem:[#allocation6 + $0x168] sm:$0xff]
    %v1813 = vld [vmem:[#allocation6 + $0x170] sm:$0xff]
    %v1814 = vld [vmem:[#allocation6 + $0x178] sm:$0xff]
    %v1815 = vld [vmem:[#allocation6 + $0x180] sm:$0xff]
    %v1816 = vld [vmem:[#allocation6 + $0x188] sm:$0xff]
    %v1817 = vld [vmem:[#allocation6 + $0x190] sm:$0xff]
    %v1818 = vld [vmem:[#allocation6 + $0x198] sm:$0xff]
    %v1819 = vld [vmem:[#allocation6 + $0x1a0] sm:$0xff]
    %v1820 = vld [vmem:[#allocation6 + $0x1a8] sm:$0xff]
    %v1821 = vld [vmem:[#allocation6 + $0x1b0] sm:$0xff]
    %v1822 = vld [vmem:[#allocation6 + $0x1b8] sm:$0xff]
    %v1823 = vld [vmem:[#allocation6 + $0x1c0] sm:$0xff]
    %v1824 = vld [vmem:[#allocation6 + $0x1c8] sm:$0xff]
    %v1825 = vld [vmem:[#allocation6 + $0x1d0] sm:$0xff]
    %v1826 = vld [vmem:[#allocation6 + $0x1d8] sm:$0xff]
    %v1827 = vld [vmem:[#allocation6 + $0x1e0] sm:$0xff]
    %v1828 = vld [vmem:[#allocation6 + $0x1e8] sm:$0xff]
    %v1829 = vld [vmem:[#allocation6 + $0x1f0] sm:$0xff]
    %v1830 = vld [vmem:[#allocation6 + $0x1f8] sm:$0xff]
    %v1831 = vld [vmem:[#allocation6 + $0x200] sm:$0xff]
    %v1832 = vld [vmem:[#allocation6 + $0x208] sm:$0xff]
    %v1833 = vld [vmem:[#allocation6 + $0x210] sm:$0xff]
    %v1834 = vld [vmem:[#allocation6 + $0x218] sm:$0xff]
    %v1835 = vld [vmem:[#allocation6 + $0x220] sm:$0xff]
    %v1836 = vld [vmem:[#allocation6 + $0x228] sm:$0xff]
    %v1837 = vld [vmem:[#allocation6 + $0x230] sm:$0xff]
    %v1838 = vld [vmem:[#allocation6 + $0x238] sm:$0xff]
    %v1839 = vld [vmem:[#allocation6 + $0x240] sm:$0xff]
    %v1840 = vld [vmem:[#allocation6 + $0x248] sm:$0xff]
    %v1841 = vld [vmem:[#allocation6 + $0x250] sm:$0xff]
    %v1842 = vld [vmem:[#allocation6 + $0x258] sm:$0xff]
    %v1843 = vld [vmem:[#allocation6 + $0x260] sm:$0xff]
    %v1844 = vld [vmem:[#allocation6 + $0x268] sm:$0xff]
    %v1845 = vld [vmem:[#allocation6 + $0x270] sm:$0xff]
    %v1846 = vld [vmem:[#allocation6 + $0x278] sm:$0xff]
    %v1847 = vld [vmem:[#allocation6 + $0x280] sm:$0xff]
    %v1848 = vld [vmem:[#allocation6 + $0x288] sm:$0xff]
    %v1849 = vld [vmem:[#allocation6 + $0x290] sm:$0xff]
    %v1850 = vld [vmem:[#allocation6 + $0x298] sm:$0xff]
    %v1851 = vld [vmem:[#allocation6 + $0x2a0] sm:$0xff]
    %v1852 = vld [vmem:[#allocation6 + $0x2a8] sm:$0xff]
    %v1853 = vld [vmem:[#allocation6 + $0x2b0] sm:$0xff]
    %v1854 = vld [vmem:[#allocation6 + $0x2b8] sm:$0xff]
    %v1855 = vld [vmem:[#allocation6 + $0x2c0] sm:$0xff]
    %v1856 = vld [vmem:[#allocation6 + $0x2c8] sm:$0xff]
    %v1857 = vld [vmem:[#allocation6 + $0x2d0] sm:$0xff]
    %v1858 = vld [vmem:[#allocation6 + $0x2d8] sm:$0xff]
    %v1859 = vld [vmem:[#allocation6 + $0x2e0] sm:$0xff]
    %v1860 = vld [vmem:[#allocation6 + $0x2e8] sm:$0xff]
    %v1861 = vld [vmem:[#allocation6 + $0x2f0] sm:$0xff]
    %v1862 = vld [vmem:[#allocation6 + $0x2f8] sm:$0xff]
    %v1863 = vld [vmem:[#allocation6 + $0x300] sm:$0xff]
    %v1864 = vld [vmem:[#allocation6 + $0x308] sm:$0xff]
    %v1865 = vld [vmem:[#allocation6 + $0x310] sm:$0xff]
    %v1866 = vld [vmem:[#allocation6 + $0x318] sm:$0xff]
    %v1867 = vld [vmem:[#allocation6 + $0x320] sm:$0xff]
    %v1868 = vld [vmem:[#allocation6 + $0x328] sm:$0xff]
    %v1869 = vld [vmem:[#allocation6 + $0x330] sm:$0xff]
    %v1870 = vld [vmem:[#allocation6 + $0x338] sm:$0xff]
    %v1871 = vld [vmem:[#allocation6 + $0x340] sm:$0xff]
    %v1872 = vld [vmem:[#allocation6 + $0x348] sm:$0xff]
    %v1873 = vld [vmem:[#allocation6 + $0x350] sm:$0xff]
    %v1874 = vld [vmem:[#allocation6 + $0x358] sm:$0xff]
    %v1875 = vld [vmem:[#allocation6 + $0x360] sm:$0xff]
    %v1876 = vld [vmem:[#allocation6 + $0x368] sm:$0xff]
    %v1877 = vld [vmem:[#allocation6 + $0x370] sm:$0xff]
    %v1878 = vld [vmem:[#allocation6 + $0x378] sm:$0xff]
    %v1879 = vld [vmem:[#allocation6 + $0x380] sm:$0xff]
    %v1880 = vld [vmem:[#allocation6 + $0x388] sm:$0xff]
    %v1881 = vld [vmem:[#allocation6 + $0x390] sm:$0xff]
    %v1882 = vld [vmem:[#allocation6 + $0x398] sm:$0xff]
    %v1883 = vld [vmem:[#allocation6 + $0x3a0] sm:$0xff]
    %v1884 = vld [vmem:[#allocation6 + $0x3a8] sm:$0xff]
    %v1885 = vld [vmem:[#allocation6 + $0x3b0] sm:$0xff]
    %v1886 = vld [vmem:[#allocation6 + $0x3b8] sm:$0xff]
    %v1887 = vld [vmem:[#allocation6 + $0x3c0] sm:$0xff]
    %v1888 = vld [vmem:[#allocation6 + $0x3c8] sm:$0xff]
    %v1889 = vld [vmem:[#allocation6 + $0x3d0] sm:$0xff]
    %v1890 = vld [vmem:[#allocation6 + $0x3d8] sm:$0xff]
    %v1891 = vld [vmem:[#allocation6 + $0x3e0] sm:$0xff]
    %v1892 = vld [vmem:[#allocation6 + $0x3e8] sm:$0xff]
    %v1893 = vld [vmem:[#allocation6 + $0x3f0] sm:$0xff]
    %v1894 = vld [vmem:[#allocation6 + $0x3f8] sm:$0xff]
    %v1895 = vld [vmem:[%s7] sm:$0xf]
    %v1897 = vperm.slane %v1895, 0
    %v1898 = vperm.slane %v1895, 1
    %v1899 = vperm.slane %v1895, 2
    %v1900 = vperm.slane %v1895, 3
    %v2033 = vunpack.c.l.b16 %v1767
    %v2034 = vunpack.c.h.b16 %v1767
    %v2035 = vunpack.c.l.b16 %v1768
    %v2036 = vunpack.c.h.b16 %v1768
    %v2037 = vunpack.c.l.b16 %v1769
    %v2038 = vunpack.c.h.b16 %v1769
    %v2039 = vunpack.c.l.b16 %v1770
    %v2040 = vunpack.c.h.b16 %v1770
    %v2041 = vunpack.c.l.b16 %v1771
    %v2042 = vunpack.c.h.b16 %v1771
    %v2043 = vunpack.c.l.b16 %v1772
    %v2044 = vunpack.c.h.b16 %v1772
    %v2045 = vunpack.c.l.b16 %v1773
    %v2046 = vunpack.c.h.b16 %v1773
    %v2047 = vunpack.c.l.b16 %v1774
    %v2048 = vunpack.c.h.b16 %v1774
    %v2049 = vunpack.c.l.b16 %v1775
    %v2050 = vunpack.c.h.b16 %v1775
    %v2051 = vunpack.c.l.b16 %v1776
    %v2052 = vunpack.c.h.b16 %v1776
    %v2053 = vunpack.c.l.b16 %v1777
    %v2054 = vunpack.c.h.b16 %v1777
    %v2055 = vunpack.c.l.b16 %v1778
    %v2056 = vunpack.c.h.b16 %v1778
    %v2057 = vunpack.c.l.b16 %v1779
    %v2058 = vunpack.c.h.b16 %v1779
    %v2059 = vunpack.c.l.b16 %v1780
    %v2060 = vunpack.c.h.b16 %v1780
    %v2061 = vunpack.c.l.b16 %v1781
    %v2062 = vunpack.c.h.b16 %v1781
    %v2063 = vunpack.c.l.b16 %v1782
    %v2064 = vunpack.c.h.b16 %v1782
    %v2065 = vunpack.c.l.b16 %v1783
    %v2066 = vunpack.c.h.b16 %v1783
    %v2067 = vunpack.c.l.b16 %v1784
    %v2068 = vunpack.c.h.b16 %v1784
    %v2069 = vunpack.c.l.b16 %v1785
    %v2070 = vunpack.c.h.b16 %v1785
    %v2071 = vunpack.c.l.b16 %v1786
    %v2072 = vunpack.c.h.b16 %v1786
    %v2073 = vunpack.c.l.b16 %v1787
    %v2074 = vunpack.c.h.b16 %v1787
    %v2075 = vunpack.c.l.b16 %v1788
    %v2076 = vunpack.c.h.b16 %v1788
    %v2077 = vunpack.c.l.b16 %v1789
    %v2078 = vunpack.c.h.b16 %v1789
    %v2079 = vunpack.c.l.b16 %v1790
    %v2080 = vunpack.c.h.b16 %v1790
    %v2081 = vunpack.c.l.b16 %v1791
    %v2082 = vunpack.c.h.b16 %v1791
    %v2083 = vunpack.c.l.b16 %v1792
    %v2084 = vunpack.c.h.b16 %v1792
    %v2085 = vunpack.c.l.b16 %v1793
    %v2086 = vunpack.c.h.b16 %v1793
    %v2087 = vunpack.c.l.b16 %v1794
    %v2088 = vunpack.c.h.b16 %v1794
    %v2089 = vunpack.c.l.b16 %v1795
    %v2090 = vunpack.c.h.b16 %v1795
    %v2091 = vunpack.c.l.b16 %v1796
    %v2092 = vunpack.c.h.b16 %v1796
    %v2093 = vunpack.c.l.b16 %v1797
    %v2094 = vunpack.c.h.b16 %v1797
    %v2095 = vunpack.c.l.b16 %v1798
    %v2096 = vunpack.c.h.b16 %v1798
    %v2097 = vunpack.c.l.b16 %v1799
    %v2098 = vunpack.c.h.b16 %v1799
    %v2099 = vunpack.c.l.b16 %v1800
    %v2100 = vunpack.c.h.b16 %v1800
    %v2101 = vunpack.c.l.b16 %v1801
    %v2102 = vunpack.c.h.b16 %v1801
    %v2103 = vunpack.c.l.b16 %v1802
    %v2104 = vunpack.c.h.b16 %v1802
    %v2105 = vunpack.c.l.b16 %v1803
    %v2106 = vunpack.c.h.b16 %v1803
    %v2107 = vunpack.c.l.b16 %v1804
    %v2108 = vunpack.c.h.b16 %v1804
    %v2109 = vunpack.c.l.b16 %v1805
    %v2110 = vunpack.c.h.b16 %v1805
    %v2111 = vunpack.c.l.b16 %v1806
    %v2112 = vunpack.c.h.b16 %v1806
    %v2113 = vunpack.c.l.b16 %v1807
    %v2114 = vunpack.c.h.b16 %v1807
    %v2115 = vunpack.c.l.b16 %v1808
    %v2116 = vunpack.c.h.b16 %v1808
    %v2117 = vunpack.c.l.b16 %v1809
    %v2118 = vunpack.c.h.b16 %v1809
    %v2119 = vunpack.c.l.b16 %v1810
    %v2120 = vunpack.c.h.b16 %v1810
    %v2121 = vunpack.c.l.b16 %v1811
    %v2122 = vunpack.c.h.b16 %v1811
    %v2123 = vunpack.c.l.b16 %v1812
    %v2124 = vunpack.c.h.b16 %v1812
    %v2125 = vunpack.c.l.b16 %v1813
    %v2126 = vunpack.c.h.b16 %v1813
    %v2127 = vunpack.c.l.b16 %v1814
    %v2128 = vunpack.c.h.b16 %v1814
    %v2129 = vunpack.c.l.b16 %v1815
    %v2130 = vunpack.c.h.b16 %v1815
    %v2131 = vunpack.c.l.b16 %v1816
    %v2132 = vunpack.c.h.b16 %v1816
    %v2133 = vunpack.c.l.b16 %v1817
    %v2134 = vunpack.c.h.b16 %v1817
    %v2135 = vunpack.c.l.b16 %v1818
    %v2136 = vunpack.c.h.b16 %v1818
    %v2137 = vunpack.c.l.b16 %v1819
    %v2138 = vunpack.c.h.b16 %v1819
    %v2139 = vunpack.c.l.b16 %v1820
    %v2140 = vunpack.c.h.b16 %v1820
    %v2141 = vunpack.c.l.b16 %v1821
    %v2142 = vunpack.c.h.b16 %v1821
    %v2143 = vunpack.c.l.b16 %v1822
    %v2144 = vunpack.c.h.b16 %v1822
    %v2145 = vunpack.c.l.b16 %v1823
    %v2146 = vunpack.c.h.b16 %v1823
    %v2147 = vunpack.c.l.b16 %v1824
    %v2148 = vunpack.c.h.b16 %v1824
    %v2149 = vunpack.c.l.b16 %v1825
    %v2150 = vunpack.c.h.b16 %v1825
    %v2151 = vunpack.c.l.b16 %v1826
    %v2152 = vunpack.c.h.b16 %v1826
    %v2153 = vunpack.c.l.b16 %v1827
    %v2154 = vunpack.c.h.b16 %v1827
    %v2155 = vunpack.c.l.b16 %v1828
    %v2156 = vunpack.c.h.b16 %v1828
    %v2157 = vunpack.c.l.b16 %v1829
    %v2158 = vunpack.c.h.b16 %v1829
    %v2159 = vunpack.c.l.b16 %v1830
    %v2160 = vunpack.c.h.b16 %v1830
    %v2161 = vunpack.c.l.b16 %v1831
    %v2162 = vunpack.c.h.b16 %v1831
    %v2163 = vunpack.c.l.b16 %v1832
    %v2164 = vunpack.c.h.b16 %v1832
    %v2165 = vunpack.c.l.b16 %v1833
    %v2166 = vunpack.c.h.b16 %v1833
    %v2167 = vunpack.c.l.b16 %v1834
    %v2168 = vunpack.c.h.b16 %v1834
    %v2169 = vunpack.c.l.b16 %v1835
    %v2170 = vunpack.c.h.b16 %v1835
    %v2171 = vunpack.c.l.b16 %v1836
    %v2172 = vunpack.c.h.b16 %v1836
    %v2173 = vunpack.c.l.b16 %v1837
    %v2174 = vunpack.c.h.b16 %v1837
    %v2175 = vunpack.c.l.b16 %v1838
    %v2176 = vunpack.c.h.b16 %v1838
    %v2177 = vunpack.c.l.b16 %v1839
    %v2178 = vunpack.c.h.b16 %v1839
    %v2179 = vunpack.c.l.b16 %v1840
    %v2180 = vunpack.c.h.b16 %v1840
    %v2181 = vunpack.c.l.b16 %v1841
    %v2182 = vunpack.c.h.b16 %v1841
    %v2183 = vunpack.c.l.b16 %v1842
    %v2184 = vunpack.c.h.b16 %v1842
    %v2185 = vunpack.c.l.b16 %v1843
    %v2186 = vunpack.c.h.b16 %v1843
    %v2187 = vunpack.c.l.b16 %v1844
    %v2188 = vunpack.c.h.b16 %v1844
    %v2189 = vunpack.c.l.b16 %v1845
    %v2190 = vunpack.c.h.b16 %v1845
    %v2191 = vunpack.c.l.b16 %v1846
    %v2192 = vunpack.c.h.b16 %v1846
    %v2193 = vunpack.c.l.b16 %v1847
    %v2194 = vunpack.c.h.b16 %v1847
    %v2195 = vunpack.c.l.b16 %v1848
    %v2196 = vunpack.c.h.b16 %v1848
    %v2197 = vunpack.c.l.b16 %v1849
    %v2198 = vunpack.c.h.b16 %v1849
    %v2199 = vunpack.c.l.b16 %v1850
    %v2200 = vunpack.c.h.b16 %v1850
    %v2201 = vunpack.c.l.b16 %v1851
    %v2202 = vunpack.c.h.b16 %v1851
    %v2203 = vunpack.c.l.b16 %v1852
    %v2204 = vunpack.c.h.b16 %v1852
    %v2205 = vunpack.c.l.b16 %v1853
    %v2206 = vunpack.c.h.b16 %v1853
    %v2207 = vunpack.c.l.b16 %v1854
    %v2208 = vunpack.c.h.b16 %v1854
    %v2209 = vunpack.c.l.b16 %v1855
    %v2210 = vunpack.c.h.b16 %v1855
    %v2211 = vunpack.c.l.b16 %v1856
    %v2212 = vunpack.c.h.b16 %v1856
    %v2213 = vunpack.c.l.b16 %v1857
    %v2214 = vunpack.c.h.b16 %v1857
    %v2215 = vunpack.c.l.b16 %v1858
    %v2216 = vunpack.c.h.b16 %v1858
    %v2217 = vunpack.c.l.b16 %v1859
    %v2218 = vunpack.c.h.b16 %v1859
    %v2219 = vunpack.c.l.b16 %v1860
    %v2220 = vunpack.c.h.b16 %v1860
    %v2221 = vunpack.c.l.b16 %v1861
    %v2222 = vunpack.c.h.b16 %v1861
    %v2223 = vunpack.c.l.b16 %v1862
    %v2224 = vunpack.c.h.b16 %v1862
    %v2225 = vunpack.c.l.b16 %v1863
    %v2226 = vunpack.c.h.b16 %v1863
    %v2227 = vunpack.c.l.b16 %v1864
    %v2228 = vunpack.c.h.b16 %v1864
    %v2229 = vunpack.c.l.b16 %v1865
    %v2230 = vunpack.c.h.b16 %v1865
    %v2231 = vunpack.c.l.b16 %v1866
    %v2232 = vunpack.c.h.b16 %v1866
    %v2233 = vunpack.c.l.b16 %v1867
    %v2234 = vunpack.c.h.b16 %v1867
    %v2235 = vunpack.c.l.b16 %v1868
    %v2236 = vunpack.c.h.b16 %v1868
    %v2237 = vunpack.c.l.b16 %v1869
    %v2238 = vunpack.c.h.b16 %v1869
    %v2239 = vunpack.c.l.b16 %v1870
    %v2240 = vunpack.c.h.b16 %v1870
    %v2241 = vunpack.c.l.b16 %v1871
    %v2242 = vunpack.c.h.b16 %v1871
    %v2243 = vunpack.c.l.b16 %v1872
    %v2244 = vunpack.c.h.b16 %v1872
    %v2245 = vunpack.c.l.b16 %v1873
    %v2246 = vunpack.c.h.b16 %v1873
    %v2247 = vunpack.c.l.b16 %v1874
    %v2248 = vunpack.c.h.b16 %v1874
    %v2249 = vunpack.c.l.b16 %v1875
    %v2250 = vunpack.c.h.b16 %v1875
    %v2251 = vunpack.c.l.b16 %v1876
    %v2252 = vunpack.c.h.b16 %v1876
    %v2253 = vunpack.c.l.b16 %v1877
    %v2254 = vunpack.c.h.b16 %v1877
    %v2255 = vunpack.c.l.b16 %v1878
    %v2256 = vunpack.c.h.b16 %v1878
    %v2257 = vunpack.c.l.b16 %v1879
    %v2258 = vunpack.c.h.b16 %v1879
    %v2259 = vunpack.c.l.b16 %v1880
    %v2260 = vunpack.c.h.b16 %v1880
    %v2261 = vunpack.c.l.b16 %v1881
    %v2262 = vunpack.c.h.b16 %v1881
    %v2263 = vunpack.c.l.b16 %v1882
    %v2264 = vunpack.c.h.b16 %v1882
    %v2265 = vunpack.c.l.b16 %v1883
    %v2266 = vunpack.c.h.b16 %v1883
    %v2267 = vunpack.c.l.b16 %v1884
    %v2268 = vunpack.c.h.b16 %v1884
    %v2269 = vunpack.c.l.b16 %v1885
    %v2270 = vunpack.c.h.b16 %v1885
    %v2271 = vunpack.c.l.b16 %v1886
    %v2272 = vunpack.c.h.b16 %v1886
    %v2273 = vunpack.c.l.b16 %v1887
    %v2274 = vunpack.c.h.b16 %v1887
    %v2275 = vunpack.c.l.b16 %v1888
    %v2276 = vunpack.c.h.b16 %v1888
    %v2277 = vunpack.c.l.b16 %v1889
    %v2278 = vunpack.c.h.b16 %v1889
    %v2279 = vunpack.c.l.b16 %v1890
    %v2280 = vunpack.c.h.b16 %v1890
    %v2281 = vunpack.c.l.b16 %v1891
    %v2282 = vunpack.c.h.b16 %v1891
    %v2283 = vunpack.c.l.b16 %v1892
    %v2284 = vunpack.c.h.b16 %v1892
    %v2285 = vunpack.c.l.b16 %v1893
    %v2286 = vunpack.c.h.b16 %v1893
    %v2287 = vunpack.c.l.b16 %v1894
    %v2288 = vunpack.c.h.b16 %v1894
    %v2289 = vpack.c.b16 %v2037, %v2033
    %v2290 = vpack.c.b16 %v2038, %v2034
    %v2291 = vpack.c.b16 %v2039, %v2035
    %v2292 = vpack.c.b16 %v2040, %v2036
    %v2293 = vpack.c.b16 %v2045, %v2041
    %v2294 = vpack.c.b16 %v2046, %v2042
    %v2295 = vpack.c.b16 %v2047, %v2043
    %v2296 = vpack.c.b16 %v2048, %v2044
    %v2297 = vpack.c.b16 %v2053, %v2049
    %v2298 = vpack.c.b16 %v2054, %v2050
    %v2299 = vpack.c.b16 %v2055, %v2051
    %v2300 = vpack.c.b16 %v2056, %v2052
    %v2301 = vpack.c.b16 %v2061, %v2057
    %v2302 = vpack.c.b16 %v2062, %v2058
    %v2303 = vpack.c.b16 %v2063, %v2059
    %v2304 = vpack.c.b16 %v2064, %v2060
    %v2305 = vpack.c.b16 %v2069, %v2065
    %v2306 = vpack.c.b16 %v2070, %v2066
    %v2307 = vpack.c.b16 %v2071, %v2067
    %v2308 = vpack.c.b16 %v2072, %v2068
    %v2309 = vpack.c.b16 %v2077, %v2073
    %v2310 = vpack.c.b16 %v2078, %v2074
    %v2311 = vpack.c.b16 %v2079, %v2075
    %v2312 = vpack.c.b16 %v2080, %v2076
    %v2313 = vpack.c.b16 %v2085, %v2081
    %v2314 = vpack.c.b16 %v2086, %v2082
    %v2315 = vpack.c.b16 %v2087, %v2083
    %v2316 = vpack.c.b16 %v2088, %v2084
    %v2317 = vpack.c.b16 %v2093, %v2089
    %v2318 = vpack.c.b16 %v2094, %v2090
    %v2319 = vpack.c.b16 %v2095, %v2091
    %v2320 = vpack.c.b16 %v2096, %v2092
    %v2321 = vpack.c.b16 %v2101, %v2097
    %v2322 = vpack.c.b16 %v2102, %v2098
    %v2323 = vpack.c.b16 %v2103, %v2099
    %v2324 = vpack.c.b16 %v2104, %v2100
    %v2325 = vpack.c.b16 %v2109, %v2105
    %v2326 = vpack.c.b16 %v2110, %v2106
    %v2327 = vpack.c.b16 %v2111, %v2107
    %v2328 = vpack.c.b16 %v2112, %v2108
    %v2329 = vpack.c.b16 %v2117, %v2113
    %v2330 = vpack.c.b16 %v2118, %v2114
    %v2331 = vpack.c.b16 %v2119, %v2115
    %v2332 = vpack.c.b16 %v2120, %v2116
    %v2333 = vpack.c.b16 %v2125, %v2121
    %v2334 = vpack.c.b16 %v2126, %v2122
    %v2335 = vpack.c.b16 %v2127, %v2123
    %v2336 = vpack.c.b16 %v2128, %v2124
    %v2337 = vpack.c.b16 %v2133, %v2129
    %v2338 = vpack.c.b16 %v2134, %v2130
    %v2339 = vpack.c.b16 %v2135, %v2131
    %v2340 = vpack.c.b16 %v2136, %v2132
    %v2341 = vpack.c.b16 %v2141, %v2137
    %v2342 = vpack.c.b16 %v2142, %v2138
    %v2343 = vpack.c.b16 %v2143, %v2139
    %v2344 = vpack.c.b16 %v2144, %v2140
    %v2345 = vpack.c.b16 %v2149, %v2145
    %v2346 = vpack.c.b16 %v2150, %v2146
    %v2347 = vpack.c.b16 %v2151, %v2147
    %v2348 = vpack.c.b16 %v2152, %v2148
    %v2349 = vpack.c.b16 %v2157, %v2153
    %v2350 = vpack.c.b16 %v2158, %v2154
    %v2351 = vpack.c.b16 %v2159, %v2155
    %v2352 = vpack.c.b16 %v2160, %v2156
    %v2353 = vpack.c.b16 %v2165, %v2161
    %v2354 = vpack.c.b16 %v2166, %v2162
    %v2355 = vpack.c.b16 %v2167, %v2163
    %v2356 = vpack.c.b16 %v2168, %v2164
    %v2357 = vpack.c.b16 %v2173, %v2169
    %v2358 = vpack.c.b16 %v2174, %v2170
    %v2359 = vpack.c.b16 %v2175, %v2171
    %v2360 = vpack.c.b16 %v2176, %v2172
    %v2361 = vpack.c.b16 %v2181, %v2177
    %v2362 = vpack.c.b16 %v2182, %v2178
    %v2363 = vpack.c.b16 %v2183, %v2179
    %v2364 = vpack.c.b16 %v2184, %v2180
    %v2365 = vpack.c.b16 %v2189, %v2185
    %v2366 = vpack.c.b16 %v2190, %v2186
    %v2367 = vpack.c.b16 %v2191, %v2187
    %v2368 = vpack.c.b16 %v2192, %v2188
    %v2369 = vpack.c.b16 %v2197, %v2193
    %v2370 = vpack.c.b16 %v2198, %v2194
    %v2371 = vpack.c.b16 %v2199, %v2195
    %v2372 = vpack.c.b16 %v2200, %v2196
    %v2373 = vpack.c.b16 %v2205, %v2201
    %v2374 = vpack.c.b16 %v2206, %v2202
    %v2375 = vpack.c.b16 %v2207, %v2203
    %v2376 = vpack.c.b16 %v2208, %v2204
    %v2377 = vpack.c.b16 %v2213, %v2209
    %v2378 = vpack.c.b16 %v2214, %v2210
    %v2379 = vpack.c.b16 %v2215, %v2211
    %v2380 = vpack.c.b16 %v2216, %v2212
    %v2381 = vpack.c.b16 %v2221, %v2217
    %v2382 = vpack.c.b16 %v2222, %v2218
    %v2383 = vpack.c.b16 %v2223, %v2219
    %v2384 = vpack.c.b16 %v2224, %v2220
    %v2385 = vpack.c.b16 %v2229, %v2225
    %v2386 = vpack.c.b16 %v2230, %v2226
    %v2387 = vpack.c.b16 %v2231, %v2227
    %v2388 = vpack.c.b16 %v2232, %v2228
    %v2389 = vpack.c.b16 %v2237, %v2233
    %v2390 = vpack.c.b16 %v2238, %v2234
    %v2391 = vpack.c.b16 %v2239, %v2235
    %v2392 = vpack.c.b16 %v2240, %v2236
    %v2393 = vpack.c.b16 %v2245, %v2241
    %v2394 = vpack.c.b16 %v2246, %v2242
    %v2395 = vpack.c.b16 %v2247, %v2243
    %v2396 = vpack.c.b16 %v2248, %v2244
    %v2397 = vpack.c.b16 %v2253, %v2249
    %v2398 = vpack.c.b16 %v2254, %v2250
    %v2399 = vpack.c.b16 %v2255, %v2251
    %v2400 = vpack.c.b16 %v2256, %v2252
    %v2401 = vpack.c.b16 %v2261, %v2257
    %v2402 = vpack.c.b16 %v2262, %v2258
    %v2403 = vpack.c.b16 %v2263, %v2259
    %v2404 = vpack.c.b16 %v2264, %v2260
    %v2405 = vpack.c.b16 %v2269, %v2265
    %v2406 = vpack.c.b16 %v2270, %v2266
    %v2407 = vpack.c.b16 %v2271, %v2267
    %v2408 = vpack.c.b16 %v2272, %v2268
    %v2409 = vpack.c.b16 %v2277, %v2273
    %v2410 = vpack.c.b16 %v2278, %v2274
    %v2411 = vpack.c.b16 %v2279, %v2275
    %v2412 = vpack.c.b16 %v2280, %v2276
    %v2413 = vpack.c.b16 %v2285, %v2281
    %v2414 = vpack.c.b16 %v2286, %v2282
    %v2415 = vpack.c.b16 %v2287, %v2283
    %v2416 = vpack.c.b16 %v2288, %v2284
    %2545 = vmatpush.bf16.msra.mxu0 %v2317
    %2546 = vmatpush.bf16.msra.mxu0 %v2313
    %2547 = vmatpush.bf16.msra.mxu0 %v2309
    %2548 = vmatpush.bf16.msra.mxu0 %v2305
    %2549 = vmatpush.bf16.msra.mxu0 %v2301
    %2550 = vmatpush.bf16.msra.mxu0 %v2297
    %2551 = vmatpush.bf16.msra.mxu0 %v2293
    %2552 = vmatpush.bf16.msra.mxu0 %v2289
    %2553 = vmatmul.bf16.gmra.mxu0 %v1763
    %v2554 = vpop.f32.mrf.mxu0
    %v2555 = vadd.f32 %v1897, %v2554
    %v2556 = vpop.f32.mrf.mxu0
    %v2557 = vadd.f32 %v1897, %v2556
    %2558 = vdwg.mxu0
    %2559 = vmatpush.bf16.msra.mxu0 %v2349
    %2560 = vmatpush.bf16.msra.mxu0 %v2345
    %2561 = vmatpush.bf16.msra.mxu0 %v2341
    %2562 = vmatpush.bf16.msra.mxu0 %v2337
    %2563 = vmatpush.bf16.msra.mxu0 %v2333
    %2564 = vmatpush.bf16.msra.mxu0 %v2329
    %2565 = vmatpush.bf16.msra.mxu0 %v2325
    %2566 = vmatpush.bf16.msra.mxu0 %v2321
    %2567 = vmatmul.bf16.gmra.mxu0 %v1764
    %v2568 = vpop.f32.mrf.mxu0
    %v2569 = vadd.f32 %v2555, %v2568
    %v2570 = vpop.f32.mrf.mxu0
    %v2571 = vadd.f32 %v2557, %v2570
    %2572 = vdwg.mxu0
    %2573 = vmatpush.bf16.msra.mxu0 %v2381
    %2574 = vmatpush.bf16.msra.mxu0 %v2377
    %2575 = vmatpush.bf16.msra.mxu0 %v2373
    %2576 = vmatpush.bf16.msra.mxu0 %v2369
    %2577 = vmatpush.bf16.msra.mxu0 %v2365
    %2578 = vmatpush.bf16.msra.mxu0 %v2361
    %2579 = vmatpush.bf16.msra.mxu0 %v2357
    %2580 = vmatpush.bf16.msra.mxu0 %v2353
    %2581 = vmatmul.bf16.gmra.mxu0 %v1765
    %v2582 = vpop.f32.mrf.mxu0
    %v2583 = vadd.f32 %v2569, %v2582
    %v2584 = vpop.f32.mrf.mxu0
    %v2585 = vadd.f32 %v2571, %v2584
    %2586 = vdwg.mxu0
    %2587 = vmatpush.bf16.msra.mxu0 %v2413
    %2588 = vmatpush.bf16.msra.mxu0 %v2409
    %2589 = vmatpush.bf16.msra.mxu0 %v2405
    %2590 = vmatpush.bf16.msra.mxu0 %v2401
    %2591 = vmatpush.bf16.msra.mxu0 %v2397
    %2592 = vmatpush.bf16.msra.mxu0 %v2393
    %2593 = vmatpush.bf16.msra.mxu0 %v2389
    %2594 = vmatpush.bf16.msra.mxu0 %v2385
    %2595 = vmatmul.bf16.gmra.mxu0 %v1766
    %v2596 = vpop.f32.mrf.mxu0
    %v2597 = vadd.f32 %v2583, %v2596
    %v2598 = vpop.f32.mrf.mxu0
    %v2599 = vadd.f32 %v2585, %v2598
    %2600 = vdwg.mxu0
    %2601 = vmatpush.bf16.msra.mxu0 %v2318
    %2602 = vmatpush.bf16.msra.mxu0 %v2314
    %2603 = vmatpush.bf16.msra.mxu0 %v2310
    %2604 = vmatpush.bf16.msra.mxu0 %v2306
    %2605 = vmatpush.bf16.msra.mxu0 %v2302
    %2606 = vmatpush.bf16.msra.mxu0 %v2298
    %2607 = vmatpush.bf16.msra.mxu0 %v2294
    %2608 = vmatpush.bf16.msra.mxu0 %v2290
    %2609 = vmatmul.bf16.gmra.mxu0 %v1763
    %v2610 = vpop.f32.mrf.mxu0
    %v2611 = vadd.f32 %v1898, %v2610
    %v2612 = vpop.f32.mrf.mxu0
    %v2613 = vadd.f32 %v1898, %v2612
    %2614 = vdwg.mxu0
    %2615 = vmatpush.bf16.msra.mxu0 %v2350
    %2616 = vmatpush.bf16.msra.mxu0 %v2346
    %2617 = vmatpush.bf16.msra.mxu0 %v2342
    %2618 = vmatpush.bf16.msra.mxu0 %v2338
    %2619 = vmatpush.bf16.msra.mxu0 %v2334
    %2620 = vmatpush.bf16.msra.mxu0 %v2330
    %2621 = vmatpush.bf16.msra.mxu0 %v2326
    %2622 = vmatpush.bf16.msra.mxu0 %v2322
    %2623 = vmatmul.bf16.gmra.mxu0 %v1764
    %v2624 = vpop.f32.mrf.mxu0
    %v2625 = vadd.f32 %v2611, %v2624
    %v2626 = vpop.f32.mrf.mxu0
    %v2627 = vadd.f32 %v2613, %v2626
    %2628 = vdwg.mxu0
    %2629 = vmatpush.bf16.msra.mxu0 %v2382
    %2630 = vmatpush.bf16.msra.mxu0 %v2378
    %2631 = vmatpush.bf16.msra.mxu0 %v2374
    %2632 = vmatpush.bf16.msra.mxu0 %v2370
    %2633 = vmatpush.bf16.msra.mxu0 %v2366
    %2634 = vmatpush.bf16.msra.mxu0 %v2362
    %2635 = vmatpush.bf16.msra.mxu0 %v2358
    %2636 = vmatpush.bf16.msra.mxu0 %v2354
    %2637 = vmatmul.bf16.gmra.mxu0 %v1765
    %v2638 = vpop.f32.mrf.mxu0
    %v2639 = vadd.f32 %v2625, %v2638
    %v2640 = vpop.f32.mrf.mxu0
    %v2641 = vadd.f32 %v2627, %v2640
    %2642 = vdwg.mxu0
    %2643 = vmatpush.bf16.msra.mxu0 %v2414
    %2644 = vmatpush.bf16.msra.mxu0 %v2410
    %2645 = vmatpush.bf16.msra.mxu0 %v2406
    %2646 = vmatpush.bf16.msra.mxu0 %v2402
    %2647 = vmatpush.bf16.msra.mxu0 %v2398
    %2648 = vmatpush.bf16.msra.mxu0 %v2394
    %2649 = vmatpush.bf16.msra.mxu0 %v2390
    %2650 = vmatpush.bf16.msra.mxu0 %v2386
    %2651 = vmatmul.bf16.gmra.mxu0 %v1766
    %v2652 = vpop.f32.mrf.mxu0
    %v2653 = vadd.f32 %v2639, %v2652
    %v2654 = vpop.f32.mrf.mxu0
    %v2655 = vadd.f32 %v2641, %v2654
    %2656 = vdwg.mxu0
    %2657 = vmatpush.bf16.msra.mxu0 %v2319
    %2658 = vmatpush.bf16.msra.mxu0 %v2315
    %2659 = vmatpush.bf16.msra.mxu0 %v2311
    %2660 = vmatpush.bf16.msra.mxu0 %v2307
    %2661 = vmatpush.bf16.msra.mxu0 %v2303
    %2662 = vmatpush.bf16.msra.mxu0 %v2299
    %2663 = vmatpush.bf16.msra.mxu0 %v2295
    %2664 = vmatpush.bf16.msra.mxu0 %v2291
    %2665 = vmatmul.bf16.gmra.mxu0 %v1763
    %v2666 = vpop.f32.mrf.mxu0
    %v2667 = vadd.f32 %v1899, %v2666
    %v2668 = vpop.f32.mrf.mxu0
    %v2669 = vadd.f32 %v1899, %v2668
    %2670 = vdwg.mxu0
    %2671 = vmatpush.bf16.msra.mxu0 %v2351
    %2672 = vmatpush.bf16.msra.mxu0 %v2347
    %2673 = vmatpush.bf16.msra.mxu0 %v2343
    %2674 = vmatpush.bf16.msra.mxu0 %v2339
    %2675 = vmatpush.bf16.msra.mxu0 %v2335
    %2676 = vmatpush.bf16.msra.mxu0 %v2331
    %2677 = vmatpush.bf16.msra.mxu0 %v2327
    %2678 = vmatpush.bf16.msra.mxu0 %v2323
    %2679 = vmatmul.bf16.gmra.mxu0 %v1764
    %v2680 = vpop.f32.mrf.mxu0
    %v2681 = vadd.f32 %v2667, %v2680
    %v2682 = vpop.f32.mrf.mxu0
    %v2683 = vadd.f32 %v2669, %v2682
    %2684 = vdwg.mxu0
    %2685 = vmatpush.bf16.msra.mxu0 %v2383
    %2686 = vmatpush.bf16.msra.mxu0 %v2379
    %2687 = vmatpush.bf16.msra.mxu0 %v2375
    %2688 = vmatpush.bf16.msra.mxu0 %v2371
    %2689 = vmatpush.bf16.msra.mxu0 %v2367
    %2690 = vmatpush.bf16.msra.mxu0 %v2363
    %2691 = vmatpush.bf16.msra.mxu0 %v2359
    %2692 = vmatpush.bf16.msra.mxu0 %v2355
    %2693 = vmatmul.bf16.gmra.mxu0 %v1765
    %v2694 = vpop.f32.mrf.mxu0
    %v2695 = vadd.f32 %v2681, %v2694
    %v2696 = vpop.f32.mrf.mxu0
    %v2697 = vadd.f32 %v2683, %v2696
    %2698 = vdwg.mxu0
    %2699 = vmatpush.bf16.msra.mxu0 %v2415
    %2700 = vmatpush.bf16.msra.mxu0 %v2411
    %2701 = vmatpush.bf16.msra.mxu0 %v2407
    %2702 = vmatpush.bf16.msra.mxu0 %v2403
    %2703 = vmatpush.bf16.msra.mxu0 %v2399
    %2704 = vmatpush.bf16.msra.mxu0 %v2395
    %2705 = vmatpush.bf16.msra.mxu0 %v2391
    %2706 = vmatpush.bf16.msra.mxu0 %v2387
    %2707 = vmatmul.bf16.gmra.mxu0 %v1766
    %v2708 = vpop.f32.mrf.mxu0
    %v2709 = vadd.f32 %v2695, %v2708
    %v2710 = vpop.f32.mrf.mxu0
    %v2711 = vadd.f32 %v2697, %v2710
    %2712 = vdwg.mxu0
    %2713 = vmatpush.bf16.msra.mxu0 %v2320
    %2714 = vmatpush.bf16.msra.mxu0 %v2316
    %2715 = vmatpush.bf16.msra.mxu0 %v2312
    %2716 = vmatpush.bf16.msra.mxu0 %v2308
    %2717 = vmatpush.bf16.msra.mxu0 %v2304
    %2718 = vmatpush.bf16.msra.mxu0 %v2300
    %2719 = vmatpush.bf16.msra.mxu0 %v2296
    %2720 = vmatpush.bf16.msra.mxu0 %v2292
    %2721 = vmatmul.bf16.gmra.mxu0 %v1763
    %v2722 = vpop.f32.mrf.mxu0
    %v2723 = vadd.f32 %v1900, %v2722
    %v2724 = vpop.f32.mrf.mxu0
    %v2725 = vadd.f32 %v1900, %v2724
    %2726 = vdwg.mxu0
    %2727 = vmatpush.bf16.msra.mxu0 %v2352
    %2728 = vmatpush.bf16.msra.mxu0 %v2348
    %2729 = vmatpush.bf16.msra.mxu0 %v2344
    %2730 = vmatpush.bf16.msra.mxu0 %v2340
    %2731 = vmatpush.bf16.msra.mxu0 %v2336
    %2732 = vmatpush.bf16.msra.mxu0 %v2332
    %2733 = vmatpush.bf16.msra.mxu0 %v2328
    %2734 = vmatpush.bf16.msra.mxu0 %v2324
    %2735 = vmatmul.bf16.gmra.mxu0 %v1764
    %v2736 = vpop.f32.mrf.mxu0
    %v2737 = vadd.f32 %v2723, %v2736
    %v2738 = vpop.f32.mrf.mxu0
    %v2739 = vadd.f32 %v2725, %v2738
    %2740 = vdwg.mxu0
    %2741 = vmatpush.bf16.msra.mxu0 %v2384
    %2742 = vmatpush.bf16.msra.mxu0 %v2380
    %2743 = vmatpush.bf16.msra.mxu0 %v2376
    %2744 = vmatpush.bf16.msra.mxu0 %v2372
    %2745 = vmatpush.bf16.msra.mxu0 %v2368
    %2746 = vmatpush.bf16.msra.mxu0 %v2364
    %2747 = vmatpush.bf16.msra.mxu0 %v2360
    %2748 = vmatpush.bf16.msra.mxu0 %v2356
    %2749 = vmatmul.bf16.gmra.mxu0 %v1765
    %v2750 = vpop.f32.mrf.mxu0
    %v2751 = vadd.f32 %v2737, %v2750
    %v2752 = vpop.f32.mrf.mxu0
    %v2753 = vadd.f32 %v2739, %v2752
    %2754 = vdwg.mxu0
    %2755 = vmatpush.bf16.msra.mxu0 %v2416
    %2756 = vmatpush.bf16.msra.mxu0 %v2412
    %2757 = vmatpush.bf16.msra.mxu0 %v2408
    %2758 = vmatpush.bf16.msra.mxu0 %v2404
    %2759 = vmatpush.bf16.msra.mxu0 %v2400
    %2760 = vmatpush.bf16.msra.mxu0 %v2396
    %2761 = vmatpush.bf16.msra.mxu0 %v2392
    %2762 = vmatpush.bf16.msra.mxu0 %v2388
    %2763 = vmatmul.bf16.gmra.mxu0 %v1766
    %v2764 = vpop.f32.mrf.mxu0
    %v2765 = vadd.f32 %v2751, %v2764
    %v2766 = vpop.f32.mrf.mxu0
    %v2767 = vadd.f32 %v2753, %v2766
    %2768 = vdwg.mxu0
    %vm2769 = vcmp.gt.f32.partialorder %v2597, 0.0
    %vm2770 = vcmp.gt.f32.partialorder %v2653, 0.0
    %vm2771 = vcmp.gt.f32.partialorder %v2709, 0.0
    %vm2772 = vcmp.gt.f32.partialorder %v2765, 0.0
    %vm2773 = vcmp.gt.f32.partialorder %v2599, 0.0
    %vm2774 = vcmp.gt.f32.partialorder %v2655, 0.0
    %vm2775 = vcmp.gt.f32.partialorder %v2711, 0.0
    %vm2776 = vcmp.gt.f32.partialorder %v2767, 0.0
    %v2777 = vmul.f32 %v2597, 0.2
    %v2778 = vmul.f32 %v2653, 0.2
    %v2779 = vmul.f32 %v2709, 0.2
    %v2780 = vmul.f32 %v2765, 0.2
    %v2781 = vmul.f32 %v2599, 0.2
    %v2782 = vmul.f32 %v2655, 0.2
    %v2783 = vmul.f32 %v2711, 0.2
    %v2784 = vmul.f32 %v2767, 0.2
    %v2785 = vsel %vm2769, %v2597, %v2777
    %v2786 = vsel %vm2770, %v2653, %v2778
    %v2787 = vsel %vm2771, %v2709, %v2779
    %v2788 = vsel %vm2772, %v2765, %v2780
    %v2789 = vsel %vm2773, %v2599, %v2781
    %v2790 = vsel %vm2774, %v2655, %v2782
    %v2791 = vsel %vm2775, %v2711, %v2783
    %v2792 = vsel %vm2776, %v2767, %v2784
    %v2793 = vpack.c.bf16 %v2789, %v2785
    %v2794 = vpack.c.bf16 %v2790, %v2786
    %v2795 = vpack.c.bf16 %v2791, %v2787
    %v2796 = vpack.c.bf16 %v2792, %v2788
    %v2797 = vld [vmem:[#allocation7] sm:$0xf]
    %v2798 = vld [vmem:[#allocation7 + $0x4] sm:$0xf]
    %v2799 = vld [vmem:[#allocation7 + $0x8] sm:$0xf]
    %v2800 = vld [vmem:[#allocation7 + $0xc] sm:$0xf]
    %v2801 = vld [vmem:[#allocation7 + $0x10] sm:$0xf]
    %v2802 = vld [vmem:[#allocation7 + $0x14] sm:$0xf]
    %v2803 = vld [vmem:[#allocation7 + $0x18] sm:$0xf]
    %v2804 = vld [vmem:[#allocation7 + $0x1c] sm:$0xf]
    %v2805 = vld [vmem:[#allocation7 + $0x20] sm:$0xf]
    %v2806 = vld [vmem:[#allocation7 + $0x24] sm:$0xf]
    %v2807 = vld [vmem:[#allocation7 + $0x28] sm:$0xf]
    %v2808 = vld [vmem:[#allocation7 + $0x2c] sm:$0xf]
    %v2809 = vld [vmem:[#allocation7 + $0x30] sm:$0xf]
    %v2810 = vld [vmem:[#allocation7 + $0x34] sm:$0xf]
    %v2811 = vld [vmem:[#allocation7 + $0x38] sm:$0xf]
    %v2812 = vld [vmem:[#allocation7 + $0x3c] sm:$0xf]
    %v2813 = vld [vmem:[#allocation7 + $0x40] sm:$0xf]
    %v2814 = vld [vmem:[#allocation7 + $0x44] sm:$0xf]
    %v2815 = vld [vmem:[#allocation7 + $0x48] sm:$0xf]
    %v2816 = vld [vmem:[#allocation7 + $0x4c] sm:$0xf]
    %v2817 = vld [vmem:[#allocation7 + $0x50] sm:$0xf]
    %v2818 = vld [vmem:[#allocation7 + $0x54] sm:$0xf]
    %v2819 = vld [vmem:[#allocation7 + $0x58] sm:$0xf]
    %v2820 = vld [vmem:[#allocation7 + $0x5c] sm:$0xf]
    %v2821 = vld [vmem:[#allocation7 + $0x60] sm:$0xf]
    %v2822 = vld [vmem:[#allocation7 + $0x64] sm:$0xf]
    %v2823 = vld [vmem:[#allocation7 + $0x68] sm:$0xf]
    %v2824 = vld [vmem:[#allocation7 + $0x6c] sm:$0xf]
    %v2825 = vld [vmem:[#allocation7 + $0x70] sm:$0xf]
    %v2826 = vld [vmem:[#allocation7 + $0x74] sm:$0xf]
    %v2827 = vld [vmem:[#allocation7 + $0x78] sm:$0xf]
    %v2828 = vld [vmem:[#allocation7 + $0x7c] sm:$0xf]
    %v2829 = vld [vmem:[#allocation7 + $0x80] sm:$0xf]
    %v2830 = vld [vmem:[#allocation7 + $0x84] sm:$0xf]
    %v2831 = vld [vmem:[#allocation7 + $0x88] sm:$0xf]
    %v2832 = vld [vmem:[#allocation7 + $0x8c] sm:$0xf]
    %v2833 = vld [vmem:[#allocation7 + $0x90] sm:$0xf]
    %v2834 = vld [vmem:[#allocation7 + $0x94] sm:$0xf]
    %v2835 = vld [vmem:[#allocation7 + $0x98] sm:$0xf]
    %v2836 = vld [vmem:[#allocation7 + $0x9c] sm:$0xf]
    %v2837 = vld [vmem:[#allocation7 + $0xa0] sm:$0xf]
    %v2838 = vld [vmem:[#allocation7 + $0xa4] sm:$0xf]
    %v2839 = vld [vmem:[#allocation7 + $0xa8] sm:$0xf]
    %v2840 = vld [vmem:[#allocation7 + $0xac] sm:$0xf]
    %v2841 = vld [vmem:[#allocation7 + $0xb0] sm:$0xf]
    %v2842 = vld [vmem:[#allocation7 + $0xb4] sm:$0xf]
    %v2843 = vld [vmem:[#allocation7 + $0xb8] sm:$0xf]
    %v2844 = vld [vmem:[#allocation7 + $0xbc] sm:$0xf]
    %v2845 = vld [vmem:[#allocation7 + $0xc0] sm:$0xf]
    %v2846 = vld [vmem:[#allocation7 + $0xc4] sm:$0xf]
    %v2847 = vld [vmem:[#allocation7 + $0xc8] sm:$0xf]
    %v2848 = vld [vmem:[#allocation7 + $0xcc] sm:$0xf]
    %v2849 = vld [vmem:[#allocation7 + $0xd0] sm:$0xf]
    %v2850 = vld [vmem:[#allocation7 + $0xd4] sm:$0xf]
    %v2851 = vld [vmem:[#allocation7 + $0xd8] sm:$0xf]
    %v2852 = vld [vmem:[#allocation7 + $0xdc] sm:$0xf]
    %v2853 = vld [vmem:[#allocation7 + $0xe0] sm:$0xf]
    %v2854 = vld [vmem:[#allocation7 + $0xe4] sm:$0xf]
    %v2855 = vld [vmem:[#allocation7 + $0xe8] sm:$0xf]
    %v2856 = vld [vmem:[#allocation7 + $0xec] sm:$0xf]
    %v2857 = vld [vmem:[#allocation7 + $0xf0] sm:$0xf]
    %v2858 = vld [vmem:[#allocation7 + $0xf4] sm:$0xf]
    %v2859 = vld [vmem:[#allocation7 + $0xf8] sm:$0xf]
    %v2860 = vld [vmem:[#allocation7 + $0xfc] sm:$0xf]
    %v2861 = vld [vmem:[%s9] sm:$0x1]
    %v2863 = vperm.slane %v2861, 0
    %v2929 = vunpack.c.l.b16 %v2797
    %v2930 = vunpack.c.l.b16 %v2798
    %v2931 = vunpack.c.l.b16 %v2799
    %v2932 = vunpack.c.l.b16 %v2800
    %v2933 = vunpack.c.l.b16 %v2801
    %v2934 = vunpack.c.l.b16 %v2802
    %v2935 = vunpack.c.l.b16 %v2803
    %v2936 = vunpack.c.l.b16 %v2804
    %v2937 = vunpack.c.l.b16 %v2805
    %v2938 = vunpack.c.l.b16 %v2806
    %v2939 = vunpack.c.l.b16 %v2807
    %v2940 = vunpack.c.l.b16 %v2808
    %v2941 = vunpack.c.l.b16 %v2809
    %v2942 = vunpack.c.l.b16 %v2810
    %v2943 = vunpack.c.l.b16 %v2811
    %v2944 = vunpack.c.l.b16 %v2812
    %v2945 = vunpack.c.l.b16 %v2813
    %v2946 = vunpack.c.l.b16 %v2814
    %v2947 = vunpack.c.l.b16 %v2815
    %v2948 = vunpack.c.l.b16 %v2816
    %v2949 = vunpack.c.l.b16 %v2817
    %v2950 = vunpack.c.l.b16 %v2818
    %v2951 = vunpack.c.l.b16 %v2819
    %v2952 = vunpack.c.l.b16 %v2820
    %v2953 = vunpack.c.l.b16 %v2821
    %v2954 = vunpack.c.l.b16 %v2822
    %v2955 = vunpack.c.l.b16 %v2823
    %v2956 = vunpack.c.l.b16 %v2824
    %v2957 = vunpack.c.l.b16 %v2825
    %v2958 = vunpack.c.l.b16 %v2826
    %v2959 = vunpack.c.l.b16 %v2827
    %v2960 = vunpack.c.l.b16 %v2828
    %v2961 = vunpack.c.l.b16 %v2829
    %v2962 = vunpack.c.l.b16 %v2830
    %v2963 = vunpack.c.l.b16 %v2831
    %v2964 = vunpack.c.l.b16 %v2832
    %v2965 = vunpack.c.l.b16 %v2833
    %v2966 = vunpack.c.l.b16 %v2834
    %v2967 = vunpack.c.l.b16 %v2835
    %v2968 = vunpack.c.l.b16 %v2836
    %v2969 = vunpack.c.l.b16 %v2837
    %v2970 = vunpack.c.l.b16 %v2838
    %v2971 = vunpack.c.l.b16 %v2839
    %v2972 = vunpack.c.l.b16 %v2840
    %v2973 = vunpack.c.l.b16 %v2841
    %v2974 = vunpack.c.l.b16 %v2842
    %v2975 = vunpack.c.l.b16 %v2843
    %v2976 = vunpack.c.l.b16 %v2844
    %v2977 = vunpack.c.l.b16 %v2845
    %v2978 = vunpack.c.l.b16 %v2846
    %v2979 = vunpack.c.l.b16 %v2847
    %v2980 = vunpack.c.l.b16 %v2848
    %v2981 = vunpack.c.l.b16 %v2849
    %v2982 = vunpack.c.l.b16 %v2850
    %v2983 = vunpack.c.l.b16 %v2851
    %v2984 = vunpack.c.l.b16 %v2852
    %v2985 = vunpack.c.l.b16 %v2853
    %v2986 = vunpack.c.l.b16 %v2854
    %v2987 = vunpack.c.l.b16 %v2855
    %v2988 = vunpack.c.l.b16 %v2856
    %v2989 = vunpack.c.l.b16 %v2857
    %v2990 = vunpack.c.l.b16 %v2858
    %v2991 = vunpack.c.l.b16 %v2859
    %v2992 = vunpack.c.l.b16 %v2860
    %v2993 = vpack.c.b16 %v2930, %v2929
    %v2994 = vpack.c.b16 %v2932, %v2931
    %v2995 = vpack.c.b16 %v2934, %v2933
    %v2996 = vpack.c.b16 %v2936, %v2935
    %v2997 = vpack.c.b16 %v2938, %v2937
    %v2998 = vpack.c.b16 %v2940, %v2939
    %v2999 = vpack.c.b16 %v2942, %v2941
    %v3000 = vpack.c.b16 %v2944, %v2943
    %v3001 = vpack.c.b16 %v2946, %v2945
    %v3002 = vpack.c.b16 %v2948, %v2947
    %v3003 = vpack.c.b16 %v2950, %v2949
    %v3004 = vpack.c.b16 %v2952, %v2951
    %v3005 = vpack.c.b16 %v2954, %v2953
    %v3006 = vpack.c.b16 %v2956, %v2955
    %v3007 = vpack.c.b16 %v2958, %v2957
    %v3008 = vpack.c.b16 %v2960, %v2959
    %v3009 = vpack.c.b16 %v2962, %v2961
    %v3010 = vpack.c.b16 %v2964, %v2963
    %v3011 = vpack.c.b16 %v2966, %v2965
    %v3012 = vpack.c.b16 %v2968, %v2967
    %v3013 = vpack.c.b16 %v2970, %v2969
    %v3014 = vpack.c.b16 %v2972, %v2971
    %v3015 = vpack.c.b16 %v2974, %v2973
    %v3016 = vpack.c.b16 %v2976, %v2975
    %v3017 = vpack.c.b16 %v2978, %v2977
    %v3018 = vpack.c.b16 %v2980, %v2979
    %v3019 = vpack.c.b16 %v2982, %v2981
    %v3020 = vpack.c.b16 %v2984, %v2983
    %v3021 = vpack.c.b16 %v2986, %v2985
    %v3022 = vpack.c.b16 %v2988, %v2987
    %v3023 = vpack.c.b16 %v2990, %v2989
    %v3024 = vpack.c.b16 %v2992, %v2991
    %3057 = vmatpush.bf16.msra.mxu0 %v3000
    %3058 = vmatpush.bf16.msra.mxu0 %v2999
    %3059 = vmatpush.bf16.msra.mxu0 %v2998
    %3060 = vmatpush.bf16.msra.mxu0 %v2997
    %3061 = vmatpush.bf16.msra.mxu0 %v2996
    %3062 = vmatpush.bf16.msra.mxu0 %v2995
    %3063 = vmatpush.bf16.msra.mxu0 %v2994
    %3064 = vmatpush.bf16.msra.mxu0 %v2993
    %3065 = vmatmul.bf16.gmra.mxu0 %v2793
    %v3066 = vpop.f32.mrf.mxu0
    %v3067 = vadd.f32 %v2863, %v3066
    %v3068 = vpop.f32.mrf.mxu0
    %v3069 = vadd.f32 %v2863, %v3068
    %3070 = vdwg.mxu0
    %3071 = vmatpush.bf16.msra.mxu0 %v3008
    %3072 = vmatpush.bf16.msra.mxu0 %v3007
    %3073 = vmatpush.bf16.msra.mxu0 %v3006
    %3074 = vmatpush.bf16.msra.mxu0 %v3005
    %3075 = vmatpush.bf16.msra.mxu0 %v3004
    %3076 = vmatpush.bf16.msra.mxu0 %v3003
    %3077 = vmatpush.bf16.msra.mxu0 %v3002
    %3078 = vmatpush.bf16.msra.mxu0 %v3001
    %3079 = vmatmul.bf16.gmra.mxu0 %v2794
    %v3080 = vpop.f32.mrf.mxu0
    %v3081 = vadd.f32 %v3067, %v3080
    %v3082 = vpop.f32.mrf.mxu0
    %v3083 = vadd.f32 %v3069, %v3082
    %3084 = vdwg.mxu0
    %3085 = vmatpush.bf16.msra.mxu0 %v3016
    %3086 = vmatpush.bf16.msra.mxu0 %v3015
    %3087 = vmatpush.bf16.msra.mxu0 %v3014
    %3088 = vmatpush.bf16.msra.mxu0 %v3013
    %3089 = vmatpush.bf16.msra.mxu0 %v3012
    %3090 = vmatpush.bf16.msra.mxu0 %v3011
    %3091 = vmatpush.bf16.msra.mxu0 %v3010
    %3092 = vmatpush.bf16.msra.mxu0 %v3009
    %3093 = vmatmul.bf16.gmra.mxu0 %v2795
    %v3094 = vpop.f32.mrf.mxu0
    %v3095 = vadd.f32 %v3081, %v3094
    %v3096 = vpop.f32.mrf.mxu0
    %v3097 = vadd.f32 %v3083, %v3096
    %3098 = vdwg.mxu0
    %3099 = vmatpush.bf16.msra.mxu0 %v3024
    %3100 = vmatpush.bf16.msra.mxu0 %v3023
    %3101 = vmatpush.bf16.msra.mxu0 %v3022
    %3102 = vmatpush.bf16.msra.mxu0 %v3021
    %3103 = vmatpush.bf16.msra.mxu0 %v3020
    %3104 = vmatpush.bf16.msra.mxu0 %v3019
    %3105 = vmatpush.bf16.msra.mxu0 %v3018
    %3106 = vmatpush.bf16.msra.mxu0 %v3017
    %3107 = vmatmul.bf16.gmra.mxu0 %v2796
    %v3108 = vpop.f32.mrf.mxu0
    %v3109 = vadd.f32 %v3095, %v3108
    %v3110 = vpop.f32.mrf.mxu0
    %v3111 = vadd.f32 %v3097, %v3110
    %3112 = vdwg.mxu0
    %v3113 = vpack.c.bf16 %v3109, %v3109
    %v3114 = vpack.c.bf16 %v3111, %v3111
    %3115 = vst [vmem:[%s10] sm:$0xf] %v3113
    %3116 = vst [vmem:[%s10 + $0x4] sm:$0xf] %v3114
    // Predicated region
    $region58: #{discriminator_forward.1} parent=1 // pred_check
      _
    $region59: #{discriminator_forward.1} parent=1 // pred_check_branch
      %3118 = sbr.rel (0) target = $region61
    $region60: #{discriminator_forward.1} parent=1 // pred_region
      _
    $region61: #{discriminator_forward.1} parent=1 // pred_fallthru
      _
    // Predicated region
    $region62: #{discriminator_forward.1} parent=1 // pred_check
      _
    $region63: #{discriminator_forward.1} parent=1 // pred_check_branch
      %3120 = sbr.rel (0) target = $region65
    $region64: #{discriminator_forward.1} parent=1 // pred_region
      _
    $region65: #{discriminator_forward.1} parent=1 // pred_fallthru
      _
    %3121 = vsyncpa [#allocation3], 1
    %3122 = vsyncpa [#allocation5], 1
    %3123 = vsyncpa [#allocation8], 1

</llo_original>
